<compile_context>
chip_gen: v7x
topology: tpu7x:2x2x1
jax: 0.10.0
libtpu: 0.0.40
codegen_flags: <defaults>
</compile_context>

<pallas_src>
import math
import jax
import jax.numpy as jnp
from jax.experimental import pallas as pl
from jax.experimental.pallas import tpu as pltpu  # noqa: F401  (TPU backend assumed)

# ----------------------- config (small synthetic transformer) -----------------------
VOCAB = 50
B = 2            # batch
S = 8            # sequence length
BS = B * S       # flattened tokens
H = 32           # hidden size
NUM_HEADS = 4
HEAD_DIM = H // NUM_HEADS
FFN = 64         # intermediate size
LAYERS = 2
NUM_CLASSES = 3
LN_EPS = 1e-12
LOGIT_PAD = 128  # lane-dense logits slab width
NEG_INF = -1e9


def _layer_norm(x, gamma, beta):
    # var = E[x^2] - E[x]^2: the two lane reductions are independent and can overlap on the XLU
    mean = jnp.mean(x, axis=-1, keepdims=True)
    mean_sq = jnp.mean(x * x, axis=-1, keepdims=True)
    var = mean_sq - mean * mean
    return (x - mean) * jax.lax.rsqrt(var + LN_EPS) * gamma + beta


# ------------------------------ fused forward kernel --------------------------------
def fused_forward_kernel(ids_ref, bias_ref, pos_ref, wemb_ref,
                         wqkv_ref, bqkv_ref, wo_ref, w1_ref, b1_ref, w2_ref,
                         vec_ref, wc_ref, bc_ref, o_ref):
    f32 = jnp.float32
    bf16 = jnp.bfloat16

    # ---- embedding: one-hot(ids) @ word_emb + positional ----
    ids = ids_ref[...]                                              # (BS, 1) int32
    vocab_iota = jax.lax.broadcasted_iota(jnp.int32, (BS, VOCAB), 1)
    onehot = (vocab_iota == ids).astype(bf16)                       # (BS, VOCAB)
    x = jnp.dot(onehot, wemb_ref[...], preferred_element_type=f32)  # (BS, H) f32
    x = x + pos_ref[...]

    # additive attention bias (block-diagonal across batch + key padding), (BS, BS) f32
    bias = bias_ref[...]

    for l in range(LAYERS):                                         # static unroll (2)
        vecs = vec_ref[l]                                           # (6, H) f32
        bo, ln1_g, ln1_b = vecs[0:1], vecs[1:2], vecs[2:3]
        b2, ln2_g, ln2_b = vecs[3:4], vecs[4:5], vecs[5:6]

        xb = x.astype(bf16)

        # fused QKV projection: single (BS,H)@(H,3H) MXU push, f32 accumulate + bias,
        # one bf16 cast of the whole slab.  Softmax scale is pre-folded into the Q part,
        # the K bias is pre-dropped (cancels in softmax).
        qkv = (jnp.dot(xb, wqkv_ref[l], preferred_element_type=f32)
               + bqkv_ref[l]).astype(bf16)                          # (BS, 3H) bf16

        # per-head attention from static lane slices (offsets are multiples of HEAD_DIM)
        ctx_parts = []
        for h in range(NUM_HEADS):
            lo = h * HEAD_DIM
            q_h = qkv[:, lo:lo + HEAD_DIM]                          # (BS, hd) bf16
            k_h = qkv[:, H + lo:H + lo + HEAD_DIM]
            v_h = qkv[:, 2 * H + lo:2 * H + lo + HEAD_DIM]

            s = jax.lax.dot_general(q_h, k_h, (((1,), (1,)), ((), ())),
                                    preferred_element_type=f32) + bias   # (BS, BS) f32
            s = s - jnp.max(s, axis=-1, keepdims=True)
            p = jnp.exp(s)
            probs = p / jnp.sum(p, axis=-1, keepdims=True)          # exact division
            ctx_parts.append(jnp.dot(probs.astype(bf16), v_h,
                                     preferred_element_type=f32))   # (BS, hd) f32

        # single output projection: concat heads -> one (BS,H)@(H,H) matmul
        ctx = jnp.concatenate(ctx_parts, axis=-1).astype(bf16)      # (BS, H) bf16
        attn = jnp.dot(ctx, wo_ref[l], preferred_element_type=f32) + bo

        h1 = _layer_norm(x + attn, ln1_g, ln1_b)

        # feed-forward (bf16 MXU operands, f32 accumulation / activations)
        inter = jnp.dot(h1.astype(bf16), w1_ref[l],
                        preferred_element_type=f32) + b1_ref[l]
        # TODO(synk): HF BERT default is exact (erf) gelu; tanh approximation used here.
        inter = jax.nn.gelu(inter, approximate=True)
        ffn = jnp.dot(inter.astype(bf16), w2_ref[l],
                      preferred_element_type=f32) + b2
        x = _layer_norm(h1 + ffn, ln2_g, ln2_b)

    # classifier head for every token row, written as a lane-dense (BS, 128) slab;
    # the wrapper picks the [CLS] rows and the first NUM_CLASSES lanes.
    logits = jnp.dot(x.astype(bf16), wc_ref[...],
                     preferred_element_type=f32) + bc_ref[...]
    o_ref[...] = logits


# ------------------------------------ forward ----------------------------------------
def sentiment_classifier_forward(packed, input_ids, attention_mask):
    ids = input_ids.reshape(BS, 1).astype(jnp.int32)
    pos = jnp.tile(packed["pos_emb"], (B, 1))                              # (BS, H) f32

    # additive attention bias: same-sequence AND key-not-padded -> 0, else -1e9
    seq_id = jnp.arange(BS, dtype=jnp.int32) // S
    same = (seq_id[:, None] == seq_id[None, :]).astype(jnp.float32)        # (BS, BS)
    keep = attention_mask.reshape(-1).astype(jnp.float32)[None, :]         # (1, BS)
    attn_bias = (1.0 - same * keep) * NEG_INF                              # (BS, BS)

    out = pl.pallas_call(
        fused_forward_kernel,
        out_shape=jax.ShapeDtypeStruct((BS, LOGIT_PAD), jnp.float32),
    )(ids, attn_bias, pos,
      packed["word_emb"],
      packed["wqkv"], packed["bqkv"], packed["wo"],
      packed["w1"], packed["b1"], packed["w2"],
      packed["vecs"], packed["wc"], packed["bc"])

    # dropout is identity at inference time (p=0.1 only applies in training)
    return out[::S, :NUM_CLASSES]          # [CLS] row of each sequence -> (B, NUM_CLASSES)


# --------------------------------- parameter init ------------------------------------
def init_params(key):
    def nrm(k, shape, scale=0.02):
        return jax.random.normal(k, shape, dtype=jnp.float32) * scale

    keys = iter(jax.random.split(key, 64))
    params = {
        "word_emb": nrm(next(keys), (VOCAB, H)),
        "pos_emb": nrm(next(keys), (S, H)),
        "layers": [],
        "wc": nrm(next(keys), (H, NUM_CLASSES)),
        "bc": jnp.zeros((1, NUM_CLASSES), jnp.float32),
    }
    for _ in range(LAYERS):
        lp = {
            "wq": nrm(next(keys), (H, H)), "bq": jnp.zeros((1, H), jnp.float32),
            "wk": nrm(next(keys), (H, H)), "bk": jnp.zeros((1, H), jnp.float32),
            "wv": nrm(next(keys), (H, H)), "bv": jnp.zeros((1, H), jnp.float32),
            "wo": nrm(next(keys), (H, H)), "bo": jnp.zeros((1, H), jnp.float32),
            "ln1_g": jnp.ones((1, H), jnp.float32), "ln1_b": jnp.zeros((1, H), jnp.float32),
            "w1": nrm(next(keys), (H, FFN)), "b1": jnp.zeros((1, FFN), jnp.float32),
            "w2": nrm(next(keys), (FFN, H)), "b2": jnp.zeros((1, H), jnp.float32),
            "ln2_g": jnp.ones((1, H), jnp.float32), "ln2_b": jnp.zeros((1, H), jnp.float32),
        }
        params["layers"].append(lp)
    return params


def pack_params(params):
    """One-time host-side rearrangement of standard-layout weights into the fused kernel's
    layout: fused QKV weight (LAYERS,H,3H) with the softmax scale folded into the Q block and
    the (softmax-invariant) K bias dropped, fused QKV bias (LAYERS,1,3H), standard per-layer
    wo/w1/w2 stacks (bf16 MXU operands), packed bias/LN vectors (f32), lane-padded head."""
    scale = 1.0 / math.sqrt(HEAD_DIM)

    wqkv, bqkv, wo, w1, b1, w2, vecs = [], [], [], [], [], [], []
    for lp in params["layers"]:
        wqkv.append(jnp.concatenate([lp["wq"] * scale, lp["wk"], lp["wv"]], axis=1))
        # K bias is constant across keys -> cancels in softmax; store zeros in its slot.
        bqkv.append(jnp.concatenate(
            [lp["bq"] * scale, jnp.zeros_like(lp["bk"]), lp["bv"]], axis=1))
        wo.append(lp["wo"])
        w1.append(lp["w1"]); b1.append(lp["b1"]); w2.append(lp["w2"])
        vecs.append(jnp.concatenate(
            [lp["bo"], lp["ln1_g"], lp["ln1_b"], lp["b2"], lp["ln2_g"], lp["ln2_b"]],
            axis=0))

    wc_pad = jnp.zeros((H, LOGIT_PAD), jnp.float32).at[:, :NUM_CLASSES].set(params["wc"])
    bc_pad = jnp.zeros((1, LOGIT_PAD), jnp.float32).at[:, :NUM_CLASSES].set(params["bc"])

    return {
        "word_emb": params["word_emb"].astype(jnp.bfloat16),     # (VOCAB, H)
        "pos_emb": params["pos_emb"],                            # (S, H) f32 (tiled per call)
        "wqkv": jnp.stack(wqkv).astype(jnp.bfloat16),            # (LAYERS, H, 3H)
        "bqkv": jnp.stack(bqkv),                                 # (LAYERS, 1, 3H) f32
        "wo": jnp.stack(wo).astype(jnp.bfloat16),                # (LAYERS, H, H)
        "w1": jnp.stack(w1).astype(jnp.bfloat16),                # (LAYERS, H, FFN)
        "b1": jnp.stack(b1),                                     # (LAYERS, 1, FFN) f32
        "w2": jnp.stack(w2).astype(jnp.bfloat16),                # (LAYERS, FFN, H)
        "vecs": jnp.stack(vecs),                                 # (LAYERS, 6, H) f32
        "wc": wc_pad.astype(jnp.bfloat16),                       # (H, 128)
        "bc": bc_pad,                                            # (1, 128) f32
    }


if __name__ == "__main__":
    key = jax.random.PRNGKey(0)
    pkey, ikey = jax.random.split(key)
    packed = pack_params(init_params(pkey))

    input_ids = jax.random.randint(ikey, (B, S), 0, VOCAB, dtype=jnp.int32)
    # mask out the last two tokens of the second sequence (deterministic)
    attention_mask = jnp.ones((B, S), jnp.int32).at[1, S - 2:].set(0)

    logits = sentiment_classifier_forward(packed, input_ids, attention_mask)
    jax.block_until_ready(logits)
    assert logits.shape == (B, NUM_CLASSES)
    print("KERNEL_OK")
</pallas_src>

<mosaic_0001>
module attributes {stable_mosaic.version = 11 : i64} {
  func.func @fused_forward_kernel(%arg0: memref<16x1xi32, #tpu.memory_space<vmem>>, %arg1: memref<16x16xf32, #tpu.memory_space<vmem>>, %arg2: memref<16x32xf32, #tpu.memory_space<vmem>>, %arg3: memref<50x32xbf16, #tpu.memory_space<vmem>>, %arg4: memref<2x32x96xbf16, #tpu.memory_space<vmem>>, %arg5: memref<2x1x96xf32, #tpu.memory_space<vmem>>, %arg6: memref<2x32x32xbf16, #tpu.memory_space<vmem>>, %arg7: memref<2x32x64xbf16, #tpu.memory_space<vmem>>, %arg8: memref<2x1x64xf32, #tpu.memory_space<vmem>>, %arg9: memref<2x64x32xbf16, #tpu.memory_space<vmem>>, %arg10: memref<2x6x32xf32, #tpu.memory_space<vmem>>, %arg11: memref<32x128xbf16, #tpu.memory_space<vmem>>, %arg12: memref<1x128xf32, #tpu.memory_space<vmem>>, %arg13: memref<16x128xf32, #tpu.memory_space<vmem>>) attributes {dimension_semantics = [], scalar_prefetch = 0 : i64, scratch_operands = 0 : i64, tpu.core_type = #tpu.core_type<tc>} {
    %c0 = arith.constant 0 : index
    %c0_0 = arith.constant 0 : index
    %0 = vector.load %arg0[%c0, %c0_0] : memref<16x1xi32, #tpu.memory_space<vmem>>, vector<16x1xi32>
    %1 = tpu.iota {dimensions = array<i32: 1>} : vector<16x50xi32>
    %2 = vector.broadcast %0 : vector<16x1xi32> to vector<16x50xi32>
    %3 = arith.cmpi eq, %1, %2 : vector<16x50xi32>
    %4 = arith.extui %3 : vector<16x50xi1> to vector<16x50xi32>
    %5 = arith.sitofp %4 : vector<16x50xi32> to vector<16x50xf32>
    %6 = arith.truncf %5 : vector<16x50xf32> to vector<16x50xbf16>
    %c0_1 = arith.constant 0 : index
    %c0_2 = arith.constant 0 : index
    %7 = vector.load %arg3[%c0_1, %c0_2] : memref<50x32xbf16, #tpu.memory_space<vmem>>, vector<50x32xbf16>
    %cst = arith.constant dense<0.000000e+00> : vector<16x32xf32>
    %8 = tpu.matmul %6, %7, %cst {dimension_numbers = #tpu.dot_dimension_numbers<[1], [0], [0], [1], [0, 0, 1, 1], [], []>} : vector<16x50xbf16>, vector<50x32xbf16>, vector<16x32xf32> -> vector<16x32xf32>
    %c0_3 = arith.constant 0 : index
    %c0_4 = arith.constant 0 : index
    %9 = vector.load %arg2[%c0_3, %c0_4] : memref<16x32xf32, #tpu.memory_space<vmem>>, vector<16x32xf32>
    %10 = arith.addf %8, %9 : vector<16x32xf32>
    %c0_5 = arith.constant 0 : index
    %c0_6 = arith.constant 0 : index
    %11 = vector.load %arg1[%c0_5, %c0_6] : memref<16x16xf32, #tpu.memory_space<vmem>>, vector<16x16xf32>
    %c0_7 = arith.constant 0 : index
    %c0_8 = arith.constant 0 : index
    %c0_9 = arith.constant 0 : index
    %12 = vector.load %arg10[%c0_7, %c0_8, %c0_9] : memref<2x6x32xf32, #tpu.memory_space<vmem>>, vector<1x6x32xf32>
    %13 = vector.shape_cast %12 : vector<1x6x32xf32> to vector<6x32xf32>
    %14 = vector.extract_strided_slice %13 {offsets = [0, 0], sizes = [1, 32], strides = [1, 1]} : vector<6x32xf32> to vector<1x32xf32>
    %15 = vector.extract_strided_slice %13 {offsets = [1, 0], sizes = [1, 32], strides = [1, 1]} : vector<6x32xf32> to vector<1x32xf32>
    %16 = vector.extract_strided_slice %13 {offsets = [2, 0], sizes = [1, 32], strides = [1, 1]} : vector<6x32xf32> to vector<1x32xf32>
    %17 = vector.extract_strided_slice %13 {offsets = [3, 0], sizes = [1, 32], strides = [1, 1]} : vector<6x32xf32> to vector<1x32xf32>
    %18 = vector.extract_strided_slice %13 {offsets = [4, 0], sizes = [1, 32], strides = [1, 1]} : vector<6x32xf32> to vector<1x32xf32>
    %19 = vector.extract_strided_slice %13 {offsets = [5, 0], sizes = [1, 32], strides = [1, 1]} : vector<6x32xf32> to vector<1x32xf32>
    %20 = arith.truncf %10 : vector<16x32xf32> to vector<16x32xbf16>
    %c0_10 = arith.constant 0 : index
    %c0_11 = arith.constant 0 : index
    %c0_12 = arith.constant 0 : index
    %21 = vector.load %arg4[%c0_10, %c0_11, %c0_12] : memref<2x32x96xbf16, #tpu.memory_space<vmem>>, vector<1x32x96xbf16>
    %22 = vector.shape_cast %21 : vector<1x32x96xbf16> to vector<32x96xbf16>
    %cst_13 = arith.constant dense<0.000000e+00> : vector<16x96xf32>
    %23 = tpu.matmul %20, %22, %cst_13 {dimension_numbers = #tpu.dot_dimension_numbers<[1], [0], [0], [1], [0, 0, 1, 1], [], []>} : vector<16x32xbf16>, vector<32x96xbf16>, vector<16x96xf32> -> vector<16x96xf32>
    %c0_14 = arith.constant 0 : index
    %c0_15 = arith.constant 0 : index
    %c0_16 = arith.constant 0 : index
    %24 = vector.load %arg5[%c0_14, %c0_15, %c0_16] : memref<2x1x96xf32, #tpu.memory_space<vmem>>, vector<1x1x96xf32>
    %25 = vector.shape_cast %24 : vector<1x1x96xf32> to vector<1x96xf32>
    %26 = vector.broadcast %25 : vector<1x96xf32> to vector<16x96xf32>
    %27 = arith.addf %23, %26 : vector<16x96xf32>
    %28 = arith.truncf %27 : vector<16x96xf32> to vector<16x96xbf16>
    %29 = vector.extract_strided_slice %28 {offsets = [0, 0], sizes = [16, 8], strides = [1, 1]} : vector<16x96xbf16> to vector<16x8xbf16>
    %30 = vector.extract_strided_slice %28 {offsets = [0, 32], sizes = [16, 8], strides = [1, 1]} : vector<16x96xbf16> to vector<16x8xbf16>
    %31 = vector.extract_strided_slice %28 {offsets = [0, 64], sizes = [16, 8], strides = [1, 1]} : vector<16x96xbf16> to vector<16x8xbf16>
    %cst_17 = arith.constant dense<0.000000e+00> : vector<16x16xf32>
    %32 = tpu.matmul %29, %30, %cst_17 {dimension_numbers = #tpu.dot_dimension_numbers<[1], [1], [0], [0], [0, 0, 1, 0], [], []>} : vector<16x8xbf16>, vector<16x8xbf16>, vector<16x16xf32> -> vector<16x16xf32>
    %33 = arith.addf %32, %11 : vector<16x16xf32>
    %cst_18 = arith.constant dense<0xFF800000> : vector<16xf32>
    %34 = vector.multi_reduction <maximumf>, %33, %cst_18 [1] : vector<16x16xf32> to vector<16xf32>
    %35 = vector.shape_cast %34 : vector<16xf32> to vector<16x1xf32>
    %36 = vector.broadcast %35 : vector<16x1xf32> to vector<16x16xf32>
    %37 = arith.subf %33, %36 : vector<16x16xf32>
    %38 = math.exp %37 : vector<16x16xf32>
    %cst_19 = arith.constant dense<0.000000e+00> : vector<16xf32>
    %39 = vector.multi_reduction <add>, %38, %cst_19 [1] : vector<16x16xf32> to vector<16xf32>
    %40 = vector.shape_cast %39 : vector<16xf32> to vector<16x1xf32>
    %41 = vector.broadcast %40 : vector<16x1xf32> to vector<16x16xf32>
    %42 = arith.divf %38, %41 : vector<16x16xf32>
    %43 = arith.truncf %42 : vector<16x16xf32> to vector<16x16xbf16>
    %cst_20 = arith.constant dense<0.000000e+00> : vector<16x8xf32>
    %44 = tpu.matmul %43, %31, %cst_20 {dimension_numbers = #tpu.dot_dimension_numbers<[1], [0], [0], [1], [0, 0, 1, 1], [], []>} : vector<16x16xbf16>, vector<16x8xbf16>, vector<16x8xf32> -> vector<16x8xf32>
    %45 = vector.extract_strided_slice %28 {offsets = [0, 8], sizes = [16, 8], strides = [1, 1]} : vector<16x96xbf16> to vector<16x8xbf16>
    %46 = vector.extract_strided_slice %28 {offsets = [0, 40], sizes = [16, 8], strides = [1, 1]} : vector<16x96xbf16> to vector<16x8xbf16>
    %47 = vector.extract_strided_slice %28 {offsets = [0, 72], sizes = [16, 8], strides = [1, 1]} : vector<16x96xbf16> to vector<16x8xbf16>
    %cst_21 = arith.constant dense<0.000000e+00> : vector<16x16xf32>
    %48 = tpu.matmul %45, %46, %cst_21 {dimension_numbers = #tpu.dot_dimension_numbers<[1], [1], [0], [0], [0, 0, 1, 0], [], []>} : vector<16x8xbf16>, vector<16x8xbf16>, vector<16x16xf32> -> vector<16x16xf32>
    %49 = arith.addf %48, %11 : vector<16x16xf32>
    %cst_22 = arith.constant dense<0xFF800000> : vector<16xf32>
    %50 = vector.multi_reduction <maximumf>, %49, %cst_22 [1] : vector<16x16xf32> to vector<16xf32>
    %51 = vector.shape_cast %50 : vector<16xf32> to vector<16x1xf32>
    %52 = vector.broadcast %51 : vector<16x1xf32> to vector<16x16xf32>
    %53 = arith.subf %49, %52 : vector<16x16xf32>
    %54 = math.exp %53 : vector<16x16xf32>
    %cst_23 = arith.constant dense<0.000000e+00> : vector<16xf32>
    %55 = vector.multi_reduction <add>, %54, %cst_23 [1] : vector<16x16xf32> to vector<16xf32>
    %56 = vector.shape_cast %55 : vector<16xf32> to vector<16x1xf32>
    %57 = vector.broadcast %56 : vector<16x1xf32> to vector<16x16xf32>
    %58 = arith.divf %54, %57 : vector<16x16xf32>
    %59 = arith.truncf %58 : vector<16x16xf32> to vector<16x16xbf16>
    %cst_24 = arith.constant dense<0.000000e+00> : vector<16x8xf32>
    %60 = tpu.matmul %59, %47, %cst_24 {dimension_numbers = #tpu.dot_dimension_numbers<[1], [0], [0], [1], [0, 0, 1, 1], [], []>} : vector<16x16xbf16>, vector<16x8xbf16>, vector<16x8xf32> -> vector<16x8xf32>
    %61 = vector.extract_strided_slice %28 {offsets = [0, 16], sizes = [16, 8], strides = [1, 1]} : vector<16x96xbf16> to vector<16x8xbf16>
    %62 = vector.extract_strided_slice %28 {offsets = [0, 48], sizes = [16, 8], strides = [1, 1]} : vector<16x96xbf16> to vector<16x8xbf16>
    %63 = vector.extract_strided_slice %28 {offsets = [0, 80], sizes = [16, 8], strides = [1, 1]} : vector<16x96xbf16> to vector<16x8xbf16>
    %cst_25 = arith.constant dense<0.000000e+00> : vector<16x16xf32>
    %64 = tpu.matmul %61, %62, %cst_25 {dimension_numbers = #tpu.dot_dimension_numbers<[1], [1], [0], [0], [0, 0, 1, 0], [], []>} : vector<16x8xbf16>, vector<16x8xbf16>, vector<16x16xf32> -> vector<16x16xf32>
    %65 = arith.addf %64, %11 : vector<16x16xf32>
    %cst_26 = arith.constant dense<0xFF800000> : vector<16xf32>
    %66 = vector.multi_reduction <maximumf>, %65, %cst_26 [1] : vector<16x16xf32> to vector<16xf32>
    %67 = vector.shape_cast %66 : vector<16xf32> to vector<16x1xf32>
    %68 = vector.broadcast %67 : vector<16x1xf32> to vector<16x16xf32>
    %69 = arith.subf %65, %68 : vector<16x16xf32>
    %70 = math.exp %69 : vector<16x16xf32>
    %cst_27 = arith.constant dense<0.000000e+00> : vector<16xf32>
    %71 = vector.multi_reduction <add>, %70, %cst_27 [1] : vector<16x16xf32> to vector<16xf32>
    %72 = vector.shape_cast %71 : vector<16xf32> to vector<16x1xf32>
    %73 = vector.broadcast %72 : vector<16x1xf32> to vector<16x16xf32>
    %74 = arith.divf %70, %73 : vector<16x16xf32>
    %75 = arith.truncf %74 : vector<16x16xf32> to vector<16x16xbf16>
    %cst_28 = arith.constant dense<0.000000e+00> : vector<16x8xf32>
    %76 = tpu.matmul %75, %63, %cst_28 {dimension_numbers = #tpu.dot_dimension_numbers<[1], [0], [0], [1], [0, 0, 1, 1], [], []>} : vector<16x16xbf16>, vector<16x8xbf16>, vector<16x8xf32> -> vector<16x8xf32>
    %77 = vector.extract_strided_slice %28 {offsets = [0, 24], sizes = [16, 8], strides = [1, 1]} : vector<16x96xbf16> to vector<16x8xbf16>
    %78 = vector.extract_strided_slice %28 {offsets = [0, 56], sizes = [16, 8], strides = [1, 1]} : vector<16x96xbf16> to vector<16x8xbf16>
    %79 = vector.extract_strided_slice %28 {offsets = [0, 88], sizes = [16, 8], strides = [1, 1]} : vector<16x96xbf16> to vector<16x8xbf16>
    %cst_29 = arith.constant dense<0.000000e+00> : vector<16x16xf32>
    %80 = tpu.matmul %77, %78, %cst_29 {dimension_numbers = #tpu.dot_dimension_numbers<[1], [1], [0], [0], [0, 0, 1, 0], [], []>} : vector<16x8xbf16>, vector<16x8xbf16>, vector<16x16xf32> -> vector<16x16xf32>
    %81 = arith.addf %80, %11 : vector<16x16xf32>
    %cst_30 = arith.constant dense<0xFF800000> : vector<16xf32>
    %82 = vector.multi_reduction <maximumf>, %81, %cst_30 [1] : vector<16x16xf32> to vector<16xf32>
    %83 = vector.shape_cast %82 : vector<16xf32> to vector<16x1xf32>
    %84 = vector.broadcast %83 : vector<16x1xf32> to vector<16x16xf32>
    %85 = arith.subf %81, %84 : vector<16x16xf32>
    %86 = math.exp %85 : vector<16x16xf32>
    %cst_31 = arith.constant dense<0.000000e+00> : vector<16xf32>
    %87 = vector.multi_reduction <add>, %86, %cst_31 [1] : vector<16x16xf32> to vector<16xf32>
    %88 = vector.shape_cast %87 : vector<16xf32> to vector<16x1xf32>
    %89 = vector.broadcast %88 : vector<16x1xf32> to vector<16x16xf32>
    %90 = arith.divf %86, %89 : vector<16x16xf32>
    %91 = arith.truncf %90 : vector<16x16xf32> to vector<16x16xbf16>
    %cst_32 = arith.constant dense<0.000000e+00> : vector<16x8xf32>
    %92 = tpu.matmul %91, %79, %cst_32 {dimension_numbers = #tpu.dot_dimension_numbers<[1], [0], [0], [1], [0, 0, 1, 1], [], []>} : vector<16x16xbf16>, vector<16x8xbf16>, vector<16x8xf32> -> vector<16x8xf32>
    %93 = tpu.concatenate %44, %60, %76, %92 in 1 : vector<16x8xf32>, vector<16x8xf32>, vector<16x8xf32>, vector<16x8xf32> -> vector<16x32xf32>
    %94 = arith.truncf %93 : vector<16x32xf32> to vector<16x32xbf16>
    %c0_33 = arith.constant 0 : index
    %c0_34 = arith.constant 0 : index
    %c0_35 = arith.constant 0 : index
    %95 = vector.load %arg6[%c0_33, %c0_34, %c0_35] : memref<2x32x32xbf16, #tpu.memory_space<vmem>>, vector<1x32x32xbf16>
    %96 = vector.shape_cast %95 : vector<1x32x32xbf16> to vector<32x32xbf16>
    %cst_36 = arith.constant dense<0.000000e+00> : vector<16x32xf32>
    %97 = tpu.matmul %94, %96, %cst_36 {dimension_numbers = #tpu.dot_dimension_numbers<[1], [0], [0], [1], [0, 0, 1, 1], [], []>} : vector<16x32xbf16>, vector<32x32xbf16>, vector<16x32xf32> -> vector<16x32xf32>
    %98 = vector.broadcast %14 : vector<1x32xf32> to vector<16x32xf32>
    %99 = arith.addf %97, %98 : vector<16x32xf32>
    %100 = arith.addf %10, %99 : vector<16x32xf32>
    %cst_37 = arith.constant dense<0.000000e+00> : vector<16xf32>
    %101 = vector.multi_reduction <add>, %100, %cst_37 [1] : vector<16x32xf32> to vector<16xf32>
    %102 = vector.shape_cast %101 : vector<16xf32> to vector<16x1xf32>
    %cst_38 = arith.constant 3.200000e+01 : f32
    %103 = vector.broadcast %cst_38 : f32 to vector<16x1xf32>
    %104 = arith.divf %102, %103 : vector<16x1xf32>
    %105 = arith.mulf %100, %100 : vector<16x32xf32>
    %cst_39 = arith.constant dense<0.000000e+00> : vector<16xf32>
    %106 = vector.multi_reduction <add>, %105, %cst_39 [1] : vector<16x32xf32> to vector<16xf32>
    %107 = vector.shape_cast %106 : vector<16xf32> to vector<16x1xf32>
    %cst_40 = arith.constant 3.200000e+01 : f32
    %108 = vector.broadcast %cst_40 : f32 to vector<16x1xf32>
    %109 = arith.divf %107, %108 : vector<16x1xf32>
    %110 = arith.mulf %104, %104 : vector<16x1xf32>
    %111 = arith.subf %109, %110 : vector<16x1xf32>
    %112 = vector.broadcast %104 : vector<16x1xf32> to vector<16x32xf32>
    %113 = arith.subf %100, %112 : vector<16x32xf32>
    %cst_41 = arith.constant 9.99999996E-13 : f32
    %114 = vector.broadcast %cst_41 : f32 to vector<16x1xf32>
    %115 = arith.addf %111, %114 : vector<16x1xf32>
    %116 = math.rsqrt %115 : vector<16x1xf32>
    %117 = vector.broadcast %116 : vector<16x1xf32> to vector<16x32xf32>
    %118 = arith.mulf %113, %117 : vector<16x32xf32>
    %119 = vector.broadcast %15 : vector<1x32xf32> to vector<16x32xf32>
    %120 = arith.mulf %118, %119 : vector<16x32xf32>
    %121 = vector.broadcast %16 : vector<1x32xf32> to vector<16x32xf32>
    %122 = arith.addf %120, %121 : vector<16x32xf32>
    %123 = arith.truncf %122 : vector<16x32xf32> to vector<16x32xbf16>
    %c0_42 = arith.constant 0 : index
    %c0_43 = arith.constant 0 : index
    %c0_44 = arith.constant 0 : index
    %124 = vector.load %arg7[%c0_42, %c0_43, %c0_44] : memref<2x32x64xbf16, #tpu.memory_space<vmem>>, vector<1x32x64xbf16>
    %125 = vector.shape_cast %124 : vector<1x32x64xbf16> to vector<32x64xbf16>
    %cst_45 = arith.constant dense<0.000000e+00> : vector<16x64xf32>
    %126 = tpu.matmul %123, %125, %cst_45 {dimension_numbers = #tpu.dot_dimension_numbers<[1], [0], [0], [1], [0, 0, 1, 1], [], []>} : vector<16x32xbf16>, vector<32x64xbf16>, vector<16x64xf32> -> vector<16x64xf32>
    %c0_46 = arith.constant 0 : index
    %c0_47 = arith.constant 0 : index
    %c0_48 = arith.constant 0 : index
    %127 = vector.load %arg8[%c0_46, %c0_47, %c0_48] : memref<2x1x64xf32, #tpu.memory_space<vmem>>, vector<1x1x64xf32>
    %128 = vector.shape_cast %127 : vector<1x1x64xf32> to vector<1x64xf32>
    %129 = vector.broadcast %128 : vector<1x64xf32> to vector<16x64xf32>
    %130 = arith.addf %126, %129 : vector<16x64xf32>
    %131 = arith.mulf %130, %130 : vector<16x64xf32>
    %132 = arith.mulf %130, %131 : vector<16x64xf32>
    %cst_49 = arith.constant 4.471500e-02 : f32
    %133 = vector.broadcast %cst_49 : f32 to vector<16x64xf32>
    %134 = arith.mulf %133, %132 : vector<16x64xf32>
    %135 = arith.addf %130, %134 : vector<16x64xf32>
    %cst_50 = arith.constant 0.797884583 : f32
    %136 = vector.broadcast %cst_50 : f32 to vector<16x64xf32>
    %137 = arith.mulf %136, %135 : vector<16x64xf32>
    %138 = math.tanh %137 : vector<16x64xf32>
    %cst_51 = arith.constant 1.000000e+00 : f32
    %139 = vector.broadcast %cst_51 : f32 to vector<16x64xf32>
    %140 = arith.addf %139, %138 : vector<16x64xf32>
    %cst_52 = arith.constant 5.000000e-01 : f32
    %141 = vector.broadcast %cst_52 : f32 to vector<16x64xf32>
    %142 = arith.mulf %141, %140 : vector<16x64xf32>
    %143 = arith.mulf %130, %142 : vector<16x64xf32>
    %144 = arith.truncf %143 : vector<16x64xf32> to vector<16x64xbf16>
    %c0_53 = arith.constant 0 : index
    %c0_54 = arith.constant 0 : index
    %c0_55 = arith.constant 0 : index
    %145 = vector.load %arg9[%c0_53, %c0_54, %c0_55] : memref<2x64x32xbf16, #tpu.memory_space<vmem>>, vector<1x64x32xbf16>
    %146 = vector.shape_cast %145 : vector<1x64x32xbf16> to vector<64x32xbf16>
    %cst_56 = arith.constant dense<0.000000e+00> : vector<16x32xf32>
    %147 = tpu.matmul %144, %146, %cst_56 {dimension_numbers = #tpu.dot_dimension_numbers<[1], [0], [0], [1], [0, 0, 1, 1], [], []>} : vector<16x64xbf16>, vector<64x32xbf16>, vector<16x32xf32> -> vector<16x32xf32>
    %148 = vector.broadcast %17 : vector<1x32xf32> to vector<16x32xf32>
    %149 = arith.addf %147, %148 : vector<16x32xf32>
    %150 = arith.addf %122, %149 : vector<16x32xf32>
    %cst_57 = arith.constant dense<0.000000e+00> : vector<16xf32>
    %151 = vector.multi_reduction <add>, %150, %cst_57 [1] : vector<16x32xf32> to vector<16xf32>
    %152 = vector.shape_cast %151 : vector<16xf32> to vector<16x1xf32>
    %cst_58 = arith.constant 3.200000e+01 : f32
    %153 = vector.broadcast %cst_58 : f32 to vector<16x1xf32>
    %154 = arith.divf %152, %153 : vector<16x1xf32>
    %155 = arith.mulf %150, %150 : vector<16x32xf32>
    %cst_59 = arith.constant dense<0.000000e+00> : vector<16xf32>
    %156 = vector.multi_reduction <add>, %155, %cst_59 [1] : vector<16x32xf32> to vector<16xf32>
    %157 = vector.shape_cast %156 : vector<16xf32> to vector<16x1xf32>
    %cst_60 = arith.constant 3.200000e+01 : f32
    %158 = vector.broadcast %cst_60 : f32 to vector<16x1xf32>
    %159 = arith.divf %157, %158 : vector<16x1xf32>
    %160 = arith.mulf %154, %154 : vector<16x1xf32>
    %161 = arith.subf %159, %160 : vector<16x1xf32>
    %162 = vector.broadcast %154 : vector<16x1xf32> to vector<16x32xf32>
    %163 = arith.subf %150, %162 : vector<16x32xf32>
    %cst_61 = arith.constant 9.99999996E-13 : f32
    %164 = vector.broadcast %cst_61 : f32 to vector<16x1xf32>
    %165 = arith.addf %161, %164 : vector<16x1xf32>
    %166 = math.rsqrt %165 : vector<16x1xf32>
    %167 = vector.broadcast %166 : vector<16x1xf32> to vector<16x32xf32>
    %168 = arith.mulf %163, %167 : vector<16x32xf32>
    %169 = vector.broadcast %18 : vector<1x32xf32> to vector<16x32xf32>
    %170 = arith.mulf %168, %169 : vector<16x32xf32>
    %171 = vector.broadcast %19 : vector<1x32xf32> to vector<16x32xf32>
    %172 = arith.addf %170, %171 : vector<16x32xf32>
    %c1 = arith.constant 1 : index
    %c0_62 = arith.constant 0 : index
    %c0_63 = arith.constant 0 : index
    %173 = vector.load %arg10[%c1, %c0_62, %c0_63] : memref<2x6x32xf32, #tpu.memory_space<vmem>>, vector<1x6x32xf32>
    %174 = vector.shape_cast %173 : vector<1x6x32xf32> to vector<6x32xf32>
    %175 = vector.extract_strided_slice %174 {offsets = [0, 0], sizes = [1, 32], strides = [1, 1]} : vector<6x32xf32> to vector<1x32xf32>
    %176 = vector.extract_strided_slice %174 {offsets = [1, 0], sizes = [1, 32], strides = [1, 1]} : vector<6x32xf32> to vector<1x32xf32>
    %177 = vector.extract_strided_slice %174 {offsets = [2, 0], sizes = [1, 32], strides = [1, 1]} : vector<6x32xf32> to vector<1x32xf32>
    %178 = vector.extract_strided_slice %174 {offsets = [3, 0], sizes = [1, 32], strides = [1, 1]} : vector<6x32xf32> to vector<1x32xf32>
    %179 = vector.extract_strided_slice %174 {offsets = [4, 0], sizes = [1, 32], strides = [1, 1]} : vector<6x32xf32> to vector<1x32xf32>
    %180 = vector.extract_strided_slice %174 {offsets = [5, 0], sizes = [1, 32], strides = [1, 1]} : vector<6x32xf32> to vector<1x32xf32>
    %181 = arith.truncf %172 : vector<16x32xf32> to vector<16x32xbf16>
    %c1_64 = arith.constant 1 : index
    %c0_65 = arith.constant 0 : index
    %c0_66 = arith.constant 0 : index
    %182 = vector.load %arg4[%c1_64, %c0_65, %c0_66] : memref<2x32x96xbf16, #tpu.memory_space<vmem>>, vector<1x32x96xbf16>
    %183 = vector.shape_cast %182 : vector<1x32x96xbf16> to vector<32x96xbf16>
    %cst_67 = arith.constant dense<0.000000e+00> : vector<16x96xf32>
    %184 = tpu.matmul %181, %183, %cst_67 {dimension_numbers = #tpu.dot_dimension_numbers<[1], [0], [0], [1], [0, 0, 1, 1], [], []>} : vector<16x32xbf16>, vector<32x96xbf16>, vector<16x96xf32> -> vector<16x96xf32>
    %c1_68 = arith.constant 1 : index
    %c0_69 = arith.constant 0 : index
    %c0_70 = arith.constant 0 : index
    %185 = vector.load %arg5[%c1_68, %c0_69, %c0_70] : memref<2x1x96xf32, #tpu.memory_space<vmem>>, vector<1x1x96xf32>
    %186 = vector.shape_cast %185 : vector<1x1x96xf32> to vector<1x96xf32>
    %187 = vector.broadcast %186 : vector<1x96xf32> to vector<16x96xf32>
    %188 = arith.addf %184, %187 : vector<16x96xf32>
    %189 = arith.truncf %188 : vector<16x96xf32> to vector<16x96xbf16>
    %190 = vector.extract_strided_slice %189 {offsets = [0, 0], sizes = [16, 8], strides = [1, 1]} : vector<16x96xbf16> to vector<16x8xbf16>
    %191 = vector.extract_strided_slice %189 {offsets = [0, 32], sizes = [16, 8], strides = [1, 1]} : vector<16x96xbf16> to vector<16x8xbf16>
    %192 = vector.extract_strided_slice %189 {offsets = [0, 64], sizes = [16, 8], strides = [1, 1]} : vector<16x96xbf16> to vector<16x8xbf16>
    %cst_71 = arith.constant dense<0.000000e+00> : vector<16x16xf32>
    %193 = tpu.matmul %190, %191, %cst_71 {dimension_numbers = #tpu.dot_dimension_numbers<[1], [1], [0], [0], [0, 0, 1, 0], [], []>} : vector<16x8xbf16>, vector<16x8xbf16>, vector<16x16xf32> -> vector<16x16xf32>
    %194 = arith.addf %193, %11 : vector<16x16xf32>
    %cst_72 = arith.constant dense<0xFF800000> : vector<16xf32>
    %195 = vector.multi_reduction <maximumf>, %194, %cst_72 [1] : vector<16x16xf32> to vector<16xf32>
    %196 = vector.shape_cast %195 : vector<16xf32> to vector<16x1xf32>
    %197 = vector.broadcast %196 : vector<16x1xf32> to vector<16x16xf32>
    %198 = arith.subf %194, %197 : vector<16x16xf32>
    %199 = math.exp %198 : vector<16x16xf32>
    %cst_73 = arith.constant dense<0.000000e+00> : vector<16xf32>
    %200 = vector.multi_reduction <add>, %199, %cst_73 [1] : vector<16x16xf32> to vector<16xf32>
    %201 = vector.shape_cast %200 : vector<16xf32> to vector<16x1xf32>
    %202 = vector.broadcast %201 : vector<16x1xf32> to vector<16x16xf32>
    %203 = arith.divf %199, %202 : vector<16x16xf32>
    %204 = arith.truncf %203 : vector<16x16xf32> to vector<16x16xbf16>
    %cst_74 = arith.constant dense<0.000000e+00> : vector<16x8xf32>
    %205 = tpu.matmul %204, %192, %cst_74 {dimension_numbers = #tpu.dot_dimension_numbers<[1], [0], [0], [1], [0, 0, 1, 1], [], []>} : vector<16x16xbf16>, vector<16x8xbf16>, vector<16x8xf32> -> vector<16x8xf32>
    %206 = vector.extract_strided_slice %189 {offsets = [0, 8], sizes = [16, 8], strides = [1, 1]} : vector<16x96xbf16> to vector<16x8xbf16>
    %207 = vector.extract_strided_slice %189 {offsets = [0, 40], sizes = [16, 8], strides = [1, 1]} : vector<16x96xbf16> to vector<16x8xbf16>
    %208 = vector.extract_strided_slice %189 {offsets = [0, 72], sizes = [16, 8], strides = [1, 1]} : vector<16x96xbf16> to vector<16x8xbf16>
    %cst_75 = arith.constant dense<0.000000e+00> : vector<16x16xf32>
    %209 = tpu.matmul %206, %207, %cst_75 {dimension_numbers = #tpu.dot_dimension_numbers<[1], [1], [0], [0], [0, 0, 1, 0], [], []>} : vector<16x8xbf16>, vector<16x8xbf16>, vector<16x16xf32> -> vector<16x16xf32>
    %210 = arith.addf %209, %11 : vector<16x16xf32>
    %cst_76 = arith.constant dense<0xFF800000> : vector<16xf32>
    %211 = vector.multi_reduction <maximumf>, %210, %cst_76 [1] : vector<16x16xf32> to vector<16xf32>
    %212 = vector.shape_cast %211 : vector<16xf32> to vector<16x1xf32>
    %213 = vector.broadcast %212 : vector<16x1xf32> to vector<16x16xf32>
    %214 = arith.subf %210, %213 : vector<16x16xf32>
    %215 = math.exp %214 : vector<16x16xf32>
    %cst_77 = arith.constant dense<0.000000e+00> : vector<16xf32>
    %216 = vector.multi_reduction <add>, %215, %cst_77 [1] : vector<16x16xf32> to vector<16xf32>
    %217 = vector.shape_cast %216 : vector<16xf32> to vector<16x1xf32>
    %218 = vector.broadcast %217 : vector<16x1xf32> to vector<16x16xf32>
    %219 = arith.divf %215, %218 : vector<16x16xf32>
    %220 = arith.truncf %219 : vector<16x16xf32> to vector<16x16xbf16>
    %cst_78 = arith.constant dense<0.000000e+00> : vector<16x8xf32>
    %221 = tpu.matmul %220, %208, %cst_78 {dimension_numbers = #tpu.dot_dimension_numbers<[1], [0], [0], [1], [0, 0, 1, 1], [], []>} : vector<16x16xbf16>, vector<16x8xbf16>, vector<16x8xf32> -> vector<16x8xf32>
    %222 = vector.extract_strided_slice %189 {offsets = [0, 16], sizes = [16, 8], strides = [1, 1]} : vector<16x96xbf16> to vector<16x8xbf16>
    %223 = vector.extract_strided_slice %189 {offsets = [0, 48], sizes = [16, 8], strides = [1, 1]} : vector<16x96xbf16> to vector<16x8xbf16>
    %224 = vector.extract_strided_slice %189 {offsets = [0, 80], sizes = [16, 8], strides = [1, 1]} : vector<16x96xbf16> to vector<16x8xbf16>
    %cst_79 = arith.constant dense<0.000000e+00> : vector<16x16xf32>
    %225 = tpu.matmul %222, %223, %cst_79 {dimension_numbers = #tpu.dot_dimension_numbers<[1], [1], [0], [0], [0, 0, 1, 0], [], []>} : vector<16x8xbf16>, vector<16x8xbf16>, vector<16x16xf32> -> vector<16x16xf32>
    %226 = arith.addf %225, %11 : vector<16x16xf32>
    %cst_80 = arith.constant dense<0xFF800000> : vector<16xf32>
    %227 = vector.multi_reduction <maximumf>, %226, %cst_80 [1] : vector<16x16xf32> to vector<16xf32>
    %228 = vector.shape_cast %227 : vector<16xf32> to vector<16x1xf32>
    %229 = vector.broadcast %228 : vector<16x1xf32> to vector<16x16xf32>
    %230 = arith.subf %226, %229 : vector<16x16xf32>
    %231 = math.exp %230 : vector<16x16xf32>
    %cst_81 = arith.constant dense<0.000000e+00> : vector<16xf32>
    %232 = vector.multi_reduction <add>, %231, %cst_81 [1] : vector<16x16xf32> to vector<16xf32>
    %233 = vector.shape_cast %232 : vector<16xf32> to vector<16x1xf32>
    %234 = vector.broadcast %233 : vector<16x1xf32> to vector<16x16xf32>
    %235 = arith.divf %231, %234 : vector<16x16xf32>
    %236 = arith.truncf %235 : vector<16x16xf32> to vector<16x16xbf16>
    %cst_82 = arith.constant dense<0.000000e+00> : vector<16x8xf32>
    %237 = tpu.matmul %236, %224, %cst_82 {dimension_numbers = #tpu.dot_dimension_numbers<[1], [0], [0], [1], [0, 0, 1, 1], [], []>} : vector<16x16xbf16>, vector<16x8xbf16>, vector<16x8xf32> -> vector<16x8xf32>
    %238 = vector.extract_strided_slice %189 {offsets = [0, 24], sizes = [16, 8], strides = [1, 1]} : vector<16x96xbf16> to vector<16x8xbf16>
    %239 = vector.extract_strided_slice %189 {offsets = [0, 56], sizes = [16, 8], strides = [1, 1]} : vector<16x96xbf16> to vector<16x8xbf16>
    %240 = vector.extract_strided_slice %189 {offsets = [0, 88], sizes = [16, 8], strides = [1, 1]} : vector<16x96xbf16> to vector<16x8xbf16>
    %cst_83 = arith.constant dense<0.000000e+00> : vector<16x16xf32>
    %241 = tpu.matmul %238, %239, %cst_83 {dimension_numbers = #tpu.dot_dimension_numbers<[1], [1], [0], [0], [0, 0, 1, 0], [], []>} : vector<16x8xbf16>, vector<16x8xbf16>, vector<16x16xf32> -> vector<16x16xf32>
    %242 = arith.addf %241, %11 : vector<16x16xf32>
    %cst_84 = arith.constant dense<0xFF800000> : vector<16xf32>
    %243 = vector.multi_reduction <maximumf>, %242, %cst_84 [1] : vector<16x16xf32> to vector<16xf32>
    %244 = vector.shape_cast %243 : vector<16xf32> to vector<16x1xf32>
    %245 = vector.broadcast %244 : vector<16x1xf32> to vector<16x16xf32>
    %246 = arith.subf %242, %245 : vector<16x16xf32>
    %247 = math.exp %246 : vector<16x16xf32>
    %cst_85 = arith.constant dense<0.000000e+00> : vector<16xf32>
    %248 = vector.multi_reduction <add>, %247, %cst_85 [1] : vector<16x16xf32> to vector<16xf32>
    %249 = vector.shape_cast %248 : vector<16xf32> to vector<16x1xf32>
    %250 = vector.broadcast %249 : vector<16x1xf32> to vector<16x16xf32>
    %251 = arith.divf %247, %250 : vector<16x16xf32>
    %252 = arith.truncf %251 : vector<16x16xf32> to vector<16x16xbf16>
    %cst_86 = arith.constant dense<0.000000e+00> : vector<16x8xf32>
    %253 = tpu.matmul %252, %240, %cst_86 {dimension_numbers = #tpu.dot_dimension_numbers<[1], [0], [0], [1], [0, 0, 1, 1], [], []>} : vector<16x16xbf16>, vector<16x8xbf16>, vector<16x8xf32> -> vector<16x8xf32>
    %254 = tpu.concatenate %205, %221, %237, %253 in 1 : vector<16x8xf32>, vector<16x8xf32>, vector<16x8xf32>, vector<16x8xf32> -> vector<16x32xf32>
    %255 = arith.truncf %254 : vector<16x32xf32> to vector<16x32xbf16>
    %c1_87 = arith.constant 1 : index
    %c0_88 = arith.constant 0 : index
    %c0_89 = arith.constant 0 : index
    %256 = vector.load %arg6[%c1_87, %c0_88, %c0_89] : memref<2x32x32xbf16, #tpu.memory_space<vmem>>, vector<1x32x32xbf16>
    %257 = vector.shape_cast %256 : vector<1x32x32xbf16> to vector<32x32xbf16>
    %cst_90 = arith.constant dense<0.000000e+00> : vector<16x32xf32>
    %258 = tpu.matmul %255, %257, %cst_90 {dimension_numbers = #tpu.dot_dimension_numbers<[1], [0], [0], [1], [0, 0, 1, 1], [], []>} : vector<16x32xbf16>, vector<32x32xbf16>, vector<16x32xf32> -> vector<16x32xf32>
    %259 = vector.broadcast %175 : vector<1x32xf32> to vector<16x32xf32>
    %260 = arith.addf %258, %259 : vector<16x32xf32>
    %261 = arith.addf %172, %260 : vector<16x32xf32>
    %cst_91 = arith.constant dense<0.000000e+00> : vector<16xf32>
    %262 = vector.multi_reduction <add>, %261, %cst_91 [1] : vector<16x32xf32> to vector<16xf32>
    %263 = vector.shape_cast %262 : vector<16xf32> to vector<16x1xf32>
    %cst_92 = arith.constant 3.200000e+01 : f32
    %264 = vector.broadcast %cst_92 : f32 to vector<16x1xf32>
    %265 = arith.divf %263, %264 : vector<16x1xf32>
    %266 = arith.mulf %261, %261 : vector<16x32xf32>
    %cst_93 = arith.constant dense<0.000000e+00> : vector<16xf32>
    %267 = vector.multi_reduction <add>, %266, %cst_93 [1] : vector<16x32xf32> to vector<16xf32>
    %268 = vector.shape_cast %267 : vector<16xf32> to vector<16x1xf32>
    %cst_94 = arith.constant 3.200000e+01 : f32
    %269 = vector.broadcast %cst_94 : f32 to vector<16x1xf32>
    %270 = arith.divf %268, %269 : vector<16x1xf32>
    %271 = arith.mulf %265, %265 : vector<16x1xf32>
    %272 = arith.subf %270, %271 : vector<16x1xf32>
    %273 = vector.broadcast %265 : vector<16x1xf32> to vector<16x32xf32>
    %274 = arith.subf %261, %273 : vector<16x32xf32>
    %cst_95 = arith.constant 9.99999996E-13 : f32
    %275 = vector.broadcast %cst_95 : f32 to vector<16x1xf32>
    %276 = arith.addf %272, %275 : vector<16x1xf32>
    %277 = math.rsqrt %276 : vector<16x1xf32>
    %278 = vector.broadcast %277 : vector<16x1xf32> to vector<16x32xf32>
    %279 = arith.mulf %274, %278 : vector<16x32xf32>
    %280 = vector.broadcast %176 : vector<1x32xf32> to vector<16x32xf32>
    %281 = arith.mulf %279, %280 : vector<16x32xf32>
    %282 = vector.broadcast %177 : vector<1x32xf32> to vector<16x32xf32>
    %283 = arith.addf %281, %282 : vector<16x32xf32>
    %284 = arith.truncf %283 : vector<16x32xf32> to vector<16x32xbf16>
    %c1_96 = arith.constant 1 : index
    %c0_97 = arith.constant 0 : index
    %c0_98 = arith.constant 0 : index
    %285 = vector.load %arg7[%c1_96, %c0_97, %c0_98] : memref<2x32x64xbf16, #tpu.memory_space<vmem>>, vector<1x32x64xbf16>
    %286 = vector.shape_cast %285 : vector<1x32x64xbf16> to vector<32x64xbf16>
    %cst_99 = arith.constant dense<0.000000e+00> : vector<16x64xf32>
    %287 = tpu.matmul %284, %286, %cst_99 {dimension_numbers = #tpu.dot_dimension_numbers<[1], [0], [0], [1], [0, 0, 1, 1], [], []>} : vector<16x32xbf16>, vector<32x64xbf16>, vector<16x64xf32> -> vector<16x64xf32>
    %c1_100 = arith.constant 1 : index
    %c0_101 = arith.constant 0 : index
    %c0_102 = arith.constant 0 : index
    %288 = vector.load %arg8[%c1_100, %c0_101, %c0_102] : memref<2x1x64xf32, #tpu.memory_space<vmem>>, vector<1x1x64xf32>
    %289 = vector.shape_cast %288 : vector<1x1x64xf32> to vector<1x64xf32>
    %290 = vector.broadcast %289 : vector<1x64xf32> to vector<16x64xf32>
    %291 = arith.addf %287, %290 : vector<16x64xf32>
    %292 = arith.mulf %291, %291 : vector<16x64xf32>
    %293 = arith.mulf %291, %292 : vector<16x64xf32>
    %cst_103 = arith.constant 4.471500e-02 : f32
    %294 = vector.broadcast %cst_103 : f32 to vector<16x64xf32>
    %295 = arith.mulf %294, %293 : vector<16x64xf32>
    %296 = arith.addf %291, %295 : vector<16x64xf32>
    %cst_104 = arith.constant 0.797884583 : f32
    %297 = vector.broadcast %cst_104 : f32 to vector<16x64xf32>
    %298 = arith.mulf %297, %296 : vector<16x64xf32>
    %299 = math.tanh %298 : vector<16x64xf32>
    %cst_105 = arith.constant 1.000000e+00 : f32
    %300 = vector.broadcast %cst_105 : f32 to vector<16x64xf32>
    %301 = arith.addf %300, %299 : vector<16x64xf32>
    %cst_106 = arith.constant 5.000000e-01 : f32
    %302 = vector.broadcast %cst_106 : f32 to vector<16x64xf32>
    %303 = arith.mulf %302, %301 : vector<16x64xf32>
    %304 = arith.mulf %291, %303 : vector<16x64xf32>
    %305 = arith.truncf %304 : vector<16x64xf32> to vector<16x64xbf16>
    %c1_107 = arith.constant 1 : index
    %c0_108 = arith.constant 0 : index
    %c0_109 = arith.constant 0 : index
    %306 = vector.load %arg9[%c1_107, %c0_108, %c0_109] : memref<2x64x32xbf16, #tpu.memory_space<vmem>>, vector<1x64x32xbf16>
    %307 = vector.shape_cast %306 : vector<1x64x32xbf16> to vector<64x32xbf16>
    %cst_110 = arith.constant dense<0.000000e+00> : vector<16x32xf32>
    %308 = tpu.matmul %305, %307, %cst_110 {dimension_numbers = #tpu.dot_dimension_numbers<[1], [0], [0], [1], [0, 0, 1, 1], [], []>} : vector<16x64xbf16>, vector<64x32xbf16>, vector<16x32xf32> -> vector<16x32xf32>
    %309 = vector.broadcast %178 : vector<1x32xf32> to vector<16x32xf32>
    %310 = arith.addf %308, %309 : vector<16x32xf32>
    %311 = arith.addf %283, %310 : vector<16x32xf32>
    %cst_111 = arith.constant dense<0.000000e+00> : vector<16xf32>
    %312 = vector.multi_reduction <add>, %311, %cst_111 [1] : vector<16x32xf32> to vector<16xf32>
    %313 = vector.shape_cast %312 : vector<16xf32> to vector<16x1xf32>
    %cst_112 = arith.constant 3.200000e+01 : f32
    %314 = vector.broadcast %cst_112 : f32 to vector<16x1xf32>
    %315 = arith.divf %313, %314 : vector<16x1xf32>
    %316 = arith.mulf %311, %311 : vector<16x32xf32>
    %cst_113 = arith.constant dense<0.000000e+00> : vector<16xf32>
    %317 = vector.multi_reduction <add>, %316, %cst_113 [1] : vector<16x32xf32> to vector<16xf32>
    %318 = vector.shape_cast %317 : vector<16xf32> to vector<16x1xf32>
    %cst_114 = arith.constant 3.200000e+01 : f32
    %319 = vector.broadcast %cst_114 : f32 to vector<16x1xf32>
    %320 = arith.divf %318, %319 : vector<16x1xf32>
    %321 = arith.mulf %315, %315 : vector<16x1xf32>
    %322 = arith.subf %320, %321 : vector<16x1xf32>
    %323 = vector.broadcast %315 : vector<16x1xf32> to vector<16x32xf32>
    %324 = arith.subf %311, %323 : vector<16x32xf32>
    %cst_115 = arith.constant 9.99999996E-13 : f32
    %325 = vector.broadcast %cst_115 : f32 to vector<16x1xf32>
    %326 = arith.addf %322, %325 : vector<16x1xf32>
    %327 = math.rsqrt %326 : vector<16x1xf32>
    %328 = vector.broadcast %327 : vector<16x1xf32> to vector<16x32xf32>
    %329 = arith.mulf %324, %328 : vector<16x32xf32>
    %330 = vector.broadcast %179 : vector<1x32xf32> to vector<16x32xf32>
    %331 = arith.mulf %329, %330 : vector<16x32xf32>
    %332 = vector.broadcast %180 : vector<1x32xf32> to vector<16x32xf32>
    %333 = arith.addf %331, %332 : vector<16x32xf32>
    %334 = arith.truncf %333 : vector<16x32xf32> to vector<16x32xbf16>
    %c0_116 = arith.constant 0 : index
    %c0_117 = arith.constant 0 : index
    %335 = vector.load %arg11[%c0_116, %c0_117] : memref<32x128xbf16, #tpu.memory_space<vmem>>, vector<32x128xbf16>
    %cst_118 = arith.constant dense<0.000000e+00> : vector<16x128xf32>
    %336 = tpu.matmul %334, %335, %cst_118 {dimension_numbers = #tpu.dot_dimension_numbers<[1], [0], [0], [1], [0, 0, 1, 1], [], []>} : vector<16x32xbf16>, vector<32x128xbf16>, vector<16x128xf32> -> vector<16x128xf32>
    %c0_119 = arith.constant 0 : index
    %c0_120 = arith.constant 0 : index
    %337 = vector.load %arg12[%c0_119, %c0_120] : memref<1x128xf32, #tpu.memory_space<vmem>>, vector<1x128xf32>
    %338 = vector.broadcast %337 : vector<1x128xf32> to vector<16x128xf32>
    %339 = arith.addf %336, %338 : vector<16x128xf32>
    %c0_121 = arith.constant 0 : index
    %c0_122 = arith.constant 0 : index
    %340 = vector.load %arg13[%c0_121, %c0_122] : memref<16x128xf32, #tpu.memory_space<vmem>>, vector<16x128xf32>
    tpu.vector_store %arg13[%c0_121, %c0_122], %339 {strides = array<i32>} : memref<16x128xf32, #tpu.memory_space<vmem>>, vector<16x128xf32>,
    return
  }
}

</mosaic_0001>

<llo_original>
// kernel: tpu_custom_call.1
$region0: #{tpu_custom_call.1}
  #allocation0 [shape = 'u32[]', space=smem, size = 0x4, offset = 0x4, fixed_abs, tag = 'smem constant byte address 0x4 - core index']
  #allocation1 [shape = 'u32[144,128]{1,0:T(1,128)}', space=vmem, size = 0x12000, scoped, tag = 'internal scratch']
  %s0 = inlined_call_operand.vmem [shape: s32[16,1], index: 0, kind: input, shape index: {}]
  %s1 = inlined_call_operand.vmem [shape: f32[16,16], index: 1, kind: input, shape index: {}]
  %s2 = inlined_call_operand.vmem [shape: f32[16,32], index: 2, kind: input, shape index: {}]
  %s3 = inlined_call_operand.vmem [shape: bf16[50,32], index: 3, kind: input, shape index: {}]
  %s4 = inlined_call_operand.vmem [shape: bf16[2,32,96], index: 4, kind: input, shape index: {}]
  %s5 = inlined_call_operand.vmem [shape: f32[2,1,96], index: 5, kind: input, shape index: {}]
  %s6 = inlined_call_operand.vmem [shape: bf16[2,32,32], index: 6, kind: input, shape index: {}]
  %s7 = inlined_call_operand.vmem [shape: bf16[2,32,64], index: 7, kind: input, shape index: {}]
  %s8 = inlined_call_operand.vmem [shape: f32[2,1,64], index: 8, kind: input, shape index: {}]
  %s9 = inlined_call_operand.vmem [shape: bf16[2,64,32], index: 9, kind: input, shape index: {}]
  %s10 = inlined_call_operand.vmem [shape: f32[2,6,32], index: 10, kind: input, shape index: {}]
  %s11 = inlined_call_operand.vmem [shape: bf16[32,128], index: 11, kind: input, shape index: {}]
  %s12 = inlined_call_operand.vmem [shape: f32[1,128], index: 12, kind: input, shape index: {}]
  %s13 = inlined_call_operand.hbm [shape: f32[16,128], index: 13, kind: output, shape index: {}]
  %s14 = sld [smem:[#allocation0]]
  $region62: #{tpu_custom_call.1} parent=0
    _
  %s16 = ssub.s32 1, %s14
  %s17 = scalar_select 0, %s16, %s14
  $region1: #{tpu_custom_call.1} parent=0
    #allocation2 [shape = 'u8[8192]{0}', space=vmem, size = 0x2000, scoped, tag = 'output window, operand 0, single buffered']
    #allocation3 [shape = 's32[1]{0}', space=sflag, size = 0x4, scoped, tag = 'scoped memory for tpu_custom_call.1']
    %18 = vsyncpa [#allocation3], 0
    // Predicated region
    $region2: #{tpu_custom_call.1} parent=1 // pred_check
      _
    $region3: #{tpu_custom_call.1} parent=1 // pred_check_branch
      %20 = sbr.rel (0) target = $region5
    $region4: #{tpu_custom_call.1} parent=1 // pred_region
      _
    $region5: #{tpu_custom_call.1} parent=1 // pred_fallthru
      _
    // Predicated region
    $region6: #{tpu_custom_call.1} parent=1 // pred_check
      _
    $region7: #{tpu_custom_call.1} parent=1 // pred_check_branch
      %22 = sbr.rel (0) target = $region9
    $region8: #{tpu_custom_call.1} parent=1 // pred_region
      _
    $region9: #{tpu_custom_call.1} parent=1 // pred_fallthru
      _
    // Predicated region
    $region10: #{tpu_custom_call.1} parent=1 // pred_check
      _
    $region11: #{tpu_custom_call.1} parent=1 // pred_check_branch
      %24 = sbr.rel (0) target = $region13
    $region12: #{tpu_custom_call.1} parent=1 // pred_region
      _
    $region13: #{tpu_custom_call.1} parent=1 // pred_fallthru
      _
    // Predicated region
    $region14: #{tpu_custom_call.1} parent=1 // pred_check
      _
    $region15: #{tpu_custom_call.1} parent=1 // pred_check_branch
      %26 = sbr.rel (0) target = $region17
    $region16: #{tpu_custom_call.1} parent=1 // pred_region
      _
    $region17: #{tpu_custom_call.1} parent=1 // pred_fallthru
      _
    // Predicated region
    $region18: #{tpu_custom_call.1} parent=1 // pred_check
      _
    $region19: #{tpu_custom_call.1} parent=1 // pred_check_branch
      %28 = sbr.rel (0) target = $region21
    $region20: #{tpu_custom_call.1} parent=1 // pred_region
      _
    $region21: #{tpu_custom_call.1} parent=1 // pred_fallthru
      _
    // Predicated region
    $region22: #{tpu_custom_call.1} parent=1 // pred_check
      _
    $region23: #{tpu_custom_call.1} parent=1 // pred_check_branch
      %30 = sbr.rel (0) target = $region25
    $region24: #{tpu_custom_call.1} parent=1 // pred_region
      _
    $region25: #{tpu_custom_call.1} parent=1 // pred_fallthru
      _
    // Predicated region
    $region26: #{tpu_custom_call.1} parent=1 // pred_check
      _
    $region27: #{tpu_custom_call.1} parent=1 // pred_check_branch
      %32 = sbr.rel (0) target = $region29
    $region28: #{tpu_custom_call.1} parent=1 // pred_region
      _
    $region29: #{tpu_custom_call.1} parent=1 // pred_fallthru
      _
    // Predicated region
    $region30: #{tpu_custom_call.1} parent=1 // pred_check
      _
    $region31: #{tpu_custom_call.1} parent=1 // pred_check_branch
      %34 = sbr.rel (0) target = $region33
    $region32: #{tpu_custom_call.1} parent=1 // pred_region
      _
    $region33: #{tpu_custom_call.1} parent=1 // pred_fallthru
      _
    // Predicated region
    $region34: #{tpu_custom_call.1} parent=1 // pred_check
      _
    $region35: #{tpu_custom_call.1} parent=1 // pred_check_branch
      %36 = sbr.rel (0) target = $region37
    $region36: #{tpu_custom_call.1} parent=1 // pred_region
      _
    $region37: #{tpu_custom_call.1} parent=1 // pred_fallthru
      _
    // Predicated region
    $region38: #{tpu_custom_call.1} parent=1 // pred_check
      _
    $region39: #{tpu_custom_call.1} parent=1 // pred_check_branch
      %38 = sbr.rel (0) target = $region41
    $region40: #{tpu_custom_call.1} parent=1 // pred_region
      _
    $region41: #{tpu_custom_call.1} parent=1 // pred_fallthru
      _
    // Predicated region
    $region42: #{tpu_custom_call.1} parent=1 // pred_check
      _
    $region43: #{tpu_custom_call.1} parent=1 // pred_check_branch
      %40 = sbr.rel (0) target = $region45
    $region44: #{tpu_custom_call.1} parent=1 // pred_region
      _
    $region45: #{tpu_custom_call.1} parent=1 // pred_fallthru
      _
    // Predicated region
    $region46: #{tpu_custom_call.1} parent=1 // pred_check
      _
    $region47: #{tpu_custom_call.1} parent=1 // pred_check_branch
      %42 = sbr.rel (0) target = $region49
    $region48: #{tpu_custom_call.1} parent=1 // pred_region
      _
    $region49: #{tpu_custom_call.1} parent=1 // pred_fallthru
      _
    // Predicated region
    $region50: #{tpu_custom_call.1} parent=1 // pred_check
      _
    $region51: #{tpu_custom_call.1} parent=1 // pred_check_branch
      %44 = sbr.rel (0) target = $region53
    $region52: #{tpu_custom_call.1} parent=1 // pred_region
      _
    $region53: #{tpu_custom_call.1} parent=1 // pred_fallthru
      _
    %v46 = vld [vmem:[%s0] sm:$0xff]
    %v47 = vld [vmem:[%s0 + $0x8] sm:$0xff]
    %v48 = vlaneseq
    %v49 = vand.u32 %v48, 127
    %50 = vset.pattern.permute.xlu0 0
    %51 = vperm.xlu0 %50, %v46
    %v52 = vpop.permute.xlu0 %51
    %53 = vset.pattern.permute.xlu0 0
    %54 = vperm.xlu0 %53, %v47
    %v55 = vpop.permute.xlu0 %54
    %vm56 = vcmp.eq.s32.totalorder %v49, %v52
    %vm57 = vcmp.eq.s32.totalorder %v49, %v55
    %v58 = vsel %vm56, 1, 0
    %v59 = vsel %vm57, 1, 0
    %v60 = vcvt.s32.f32 %v58
    %v61 = vcvt.s32.f32 %v59
    %v62 = vpack.c.bf16 %v61, %v60
    %v63 = vld [vmem:[%s3] sm:$0xf]
    %v64 = vld [vmem:[%s3 + $0x4] sm:$0xf]
    %v65 = vld [vmem:[%s3 + $0x8] sm:$0xf]
    %v66 = vld [vmem:[%s3 + $0xc] sm:$0xf]
    %v67 = vld [vmem:[%s3 + $0x10] sm:$0xf]
    %v68 = vld [vmem:[%s3 + $0x14] sm:$0xf]
    %v69 = vld [vmem:[%s3 + $0x18] sm:$0x1]
    %v70 = vld [vmem:[%s2] sm:$0xff]
    %v71 = vld [vmem:[%s2 + $0x8] sm:$0xff]
    %v79 = vunpack.c.l.b16 %v63
    %v80 = vunpack.c.l.b16 %v64
    %v81 = vunpack.c.l.b16 %v65
    %v82 = vunpack.c.l.b16 %v66
    %v83 = vunpack.c.l.b16 %v67
    %v84 = vunpack.c.l.b16 %v68
    %v85 = vunpack.c.l.b16 %v69
    %v86 = vpack.c.b16 %v80, %v79
    %v87 = vpack.c.b16 %v82, %v81
    %v88 = vpack.c.b16 %v84, %v83
    %v89 = vpack.c.b16 %v85, %v85
    %vm93 = vcmask 408576
    %v95 = vsel %vm93, %v62, 0
    %vm97 = vcmask 1040384
    %v99 = vsel %vm97, %v89, 0
    %101 = vmatprep.subr.bf16.mxu0 0
    %102 = vmatpush1.bf16.msra.mxu0 %v86
    %103 = vmatprep.subr.bf16.mxu0 0
    %104 = vmatpush1.bf16.msra.mxu0 %v87
    %105 = vmatprep.subr.bf16.mxu0 0
    %106 = vmatpush1.bf16.msra.mxu0 %v88
    %107 = vmatprep.subr.bf16.mxu0 0
    %108 = vmatpush1.bf16.msra.mxu0 %v99
    %109 = vmatprep.subr.bf16.mxu0 0
    %110 = vmatpush1.bf16.msra.mxu0 0
    %111 = vmatprep.subr.bf16.mxu0 0
    %112 = vmatpush1.bf16.msra.mxu0 0
    %113 = vmatprep.subr.bf16.mxu0 0
    %114 = vmatpush1.bf16.msra.mxu0 0
    %115 = vmatprep.subr.bf16.mxu0 0
    %116 = vmatpush1.bf16.msra.mxu0 0
    %117 = vmatprep.subr.bf16.mxu0 0
    %118 = vmatpush1.bf16.msra.mxu0 0
    %119 = vmatprep.subr.bf16.mxu0 0
    %120 = vmatpush1.bf16.msra.mxu0 0
    %121 = vmatprep.subr.bf16.mxu0 0
    %122 = vmatpush1.bf16.msra.mxu0 0
    %123 = vmatprep.subr.bf16.mxu0 0
    %124 = vmatpush1.bf16.msra.mxu0 0
    %125 = vmatprep.subr.bf16.mxu0 0
    %126 = vmatpush1.bf16.msra.mxu0 0
    %127 = vmatprep.subr.bf16.mxu0 0
    %128 = vmatpush1.bf16.msra.mxu0 0
    %129 = vmatprep.subr.bf16.mxu0 0
    %130 = vmatpush1.bf16.msra.mxu0 0
    %131 = vmatprep.subr.bf16.mxu0 0
    %132 = vmatpush1.bf16.msra.mxu0 0
    %133 = vmatprep.mubr.bf16.mxu0 0
    %134 = vmatmul.mubr.bf16.gmra.mrb[0].mxu0 %v95
    %v135 = vpop.f32.mrb[0].mxu0
    %v136 = vadd.f32 %v70, %v135
    %v137 = vpop.f32.mrb[0].mxu0
    %v138 = vpop.f32.mrb[0].mxu0
    %v139 = vadd.f32 %v71, %v138
    %v140 = vpop.f32.mrb[0].mxu0
    %141 = vdwg.mxu0
    %v142 = vld [vmem:[%s1] sm:$0xff]
    %v143 = vld [vmem:[%s1 + $0x8] sm:$0xff]
    %v144 = vld [vmem:[%s10] sm:$0x3f]
    %v145 = vpack.c.bf16 %v139, %v136
    %v146 = vld [vmem:[%s4] sm:$0xf]
    %v147 = vld [vmem:[%s4 + $0x4] sm:$0xf]
    %v148 = vld [vmem:[%s4 + $0x8] sm:$0xf]
    %v149 = vld [vmem:[%s4 + $0xc] sm:$0xf]
    %v150 = vld [vmem:[%s5] sm:$0x1]
    %v152 = vlaneseq
    %v153 = vshrl.u32 %v152, 7
    %v154 = vsub.s32 0, %v153
    %v155 = vrot.slane %v150, %v154
    %v161 = vunpack.c.l.b16 %v146
    %v162 = vunpack.c.l.b16 %v147
    %v163 = vunpack.c.l.b16 %v148
    %v164 = vunpack.c.l.b16 %v149
    %v165 = vpack.c.b16 %v162, %v161
    %v166 = vpack.c.b16 %v164, %v163
    %vm169 = vcmask 261120
    %v171 = vsel %vm169, %v145, 0
    %173 = vmatprep.subr.bf16.mxu0 0
    %174 = vmatpush1.bf16.msra.mxu0 %v165
    %175 = vmatprep.subr.bf16.mxu0 0
    %176 = vmatpush1.bf16.msra.mxu0 %v166
    %177 = vmatprep.subr.bf16.mxu0 0
    %178 = vmatpush1.bf16.msra.mxu0 0
    %179 = vmatprep.subr.bf16.mxu0 0
    %180 = vmatpush1.bf16.msra.mxu0 0
    %181 = vmatprep.subr.bf16.mxu0 0
    %182 = vmatpush1.bf16.msra.mxu0 0
    %183 = vmatprep.subr.bf16.mxu0 0
    %184 = vmatpush1.bf16.msra.mxu0 0
    %185 = vmatprep.subr.bf16.mxu0 0
    %186 = vmatpush1.bf16.msra.mxu0 0
    %187 = vmatprep.subr.bf16.mxu0 0
    %188 = vmatpush1.bf16.msra.mxu0 0
    %189 = vmatprep.subr.bf16.mxu0 0
    %190 = vmatpush1.bf16.msra.mxu0 0
    %191 = vmatprep.subr.bf16.mxu0 0
    %192 = vmatpush1.bf16.msra.mxu0 0
    %193 = vmatprep.subr.bf16.mxu0 0
    %194 = vmatpush1.bf16.msra.mxu0 0
    %195 = vmatprep.subr.bf16.mxu0 0
    %196 = vmatpush1.bf16.msra.mxu0 0
    %197 = vmatprep.subr.bf16.mxu0 0
    %198 = vmatpush1.bf16.msra.mxu0 0
    %199 = vmatprep.subr.bf16.mxu0 0
    %200 = vmatpush1.bf16.msra.mxu0 0
    %201 = vmatprep.subr.bf16.mxu0 0
    %202 = vmatpush1.bf16.msra.mxu0 0
    %203 = vmatprep.subr.bf16.mxu0 0
    %204 = vmatpush1.bf16.msra.mxu0 0
    %205 = vmatprep.mubr.bf16.mxu0 0
    %206 = vmatmul.mubr.bf16.gmra.mrb[0].mxu0 %v171
    %v207 = vpop.f32.mrb[0].mxu0
    %v208 = vadd.f32 %v155, %v207
    %v209 = vpop.f32.mrb[0].mxu0
    %v210 = vpop.f32.mrb[0].mxu0
    %v211 = vadd.f32 %v155, %v210
    %v212 = vpop.f32.mrb[0].mxu0
    %213 = vdwg.mxu0
    %v214 = vpack.c.bf16 %v211, %v208
    %216 = vrot.lane.b32.xlu0 %v214, 96
    %v217 = vpop.permute.xlu0 %216
    %vm218 = vcmask 64512
    %v220 = vsel %vm218, %v214, 0
    %v223 = vsel %vm218, %v217, 0
    %225 = vmatprep.subr.bf16.mxu0 0
    %226 = vmatpush1.bf16.xpose.msra.mxu0 %v223
    %227 = vmatprep.subr.bf16.mxu0 0
    %228 = vmatpush1.bf16.xpose.msra.mxu0 0
    %229 = vmatprep.subr.bf16.mxu0 0
    %230 = vmatpush1.bf16.xpose.msra.mxu0 0
    %231 = vmatprep.subr.bf16.mxu0 0
    %232 = vmatpush1.bf16.xpose.msra.mxu0 0
    %233 = vmatprep.subr.bf16.mxu0 0
    %234 = vmatpush1.bf16.xpose.msra.mxu0 0
    %235 = vmatprep.subr.bf16.mxu0 0
    %236 = vmatpush1.bf16.xpose.msra.mxu0 0
    %237 = vmatprep.subr.bf16.mxu0 0
    %238 = vmatpush1.bf16.xpose.msra.mxu0 0
    %239 = vmatprep.subr.bf16.mxu0 0
    %240 = vmatpush1.bf16.xpose.msra.mxu0 0
    %241 = vmatprep.subr.bf16.mxu0 0
    %242 = vmatpush1.bf16.xpose.msra.mxu0 0
    %243 = vmatprep.subr.bf16.mxu0 0
    %244 = vmatpush1.bf16.xpose.msra.mxu0 0
    %245 = vmatprep.subr.bf16.mxu0 0
    %246 = vmatpush1.bf16.xpose.msra.mxu0 0
    %247 = vmatprep.subr.bf16.mxu0 0
    %248 = vmatpush1.bf16.xpose.msra.mxu0 0
    %249 = vmatprep.subr.bf16.mxu0 0
    %250 = vmatpush1.bf16.xpose.msra.mxu0 0
    %251 = vmatprep.subr.bf16.mxu0 0
    %252 = vmatpush1.bf16.xpose.msra.mxu0 0
    %253 = vmatprep.subr.bf16.mxu0 0
    %254 = vmatpush1.bf16.xpose.msra.mxu0 0
    %255 = vmatprep.subr.bf16.mxu0 0
    %256 = vmatpush1.bf16.xpose.msra.mxu0 0
    %257 = vmatprep.mubr.bf16.mxu0 0
    %258 = vmatmul.mubr.bf16.gmra.mrb[0].mxu0 %v220
    %v259 = vpop.f32.mrb[0].mxu0
    %v260 = vadd.f32 %v142, %v259
    %v261 = vpop.f32.mrb[0].mxu0
    %v262 = vpop.f32.mrb[0].mxu0
    %v263 = vadd.f32 %v143, %v262
    %v264 = vpop.f32.mrb[0].mxu0
    %265 = vdwg.mxu0
    %vm266 = vcmask 130048
    %v267 = vsel %vm266, %v260, -inf
    %268 = vmax.xlane.f32.xlu0 %v267
    %v269 = vpop.xlane.xlu0 %268
    %v270 = vsel %vm266, %v263, -inf
    %271 = vmax.xlane.f32.xlu0 %v270
    %v272 = vpop.xlane.xlu0 %271
    %v273 = vsub.f32 %v260, %v269
    %v274 = vsub.f32 %v263, %v272
    %v275 = vmul.f32 %v273, 1.442695
    %v276 = vpow.pop %v275
    %v277 = vmul.f32 %v274, 1.442695
    %v278 = vpow.pop %v277
    %v279 = vsel %vm266, %v276, 0.0
    %280 = vadd.xlane.f32.xlu0 %v279
    %v281 = vpop.xlane.xlu0 %280
    %v282 = vsel %vm266, %v278, 0.0
    %283 = vadd.xlane.f32.xlu0 %v282
    %v284 = vpop.xlane.xlu0 %283
    %v285 = vrcp.pop %v281
    %v286 = vmul.f32 %v276, %v285
    %v287 = vrcp.pop %v284
    %v288 = vmul.f32 %v278, %v287
    %v289 = vpack.c.bf16 %v288, %v286
    %290 = vrot.lane.b32.xlu0 %v214, 64
    %v291 = vpop.permute.xlu0 %290
    %v294 = vsel %vm266, %v289, 0
    %296 = vmatprep.subr.bf16.mxu0 0
    %297 = vmatpush1.bf16.msra.mxu0 %v291
    %298 = vmatprep.subr.bf16.mxu0 0
    %299 = vmatpush1.bf16.msra.mxu0 0
    %300 = vmatprep.subr.bf16.mxu0 0
    %301 = vmatpush1.bf16.msra.mxu0 0
    %302 = vmatprep.subr.bf16.mxu0 0
    %303 = vmatpush1.bf16.msra.mxu0 0
    %304 = vmatprep.subr.bf16.mxu0 0
    %305 = vmatpush1.bf16.msra.mxu0 0
    %306 = vmatprep.subr.bf16.mxu0 0
    %307 = vmatpush1.bf16.msra.mxu0 0
    %308 = vmatprep.subr.bf16.mxu0 0
    %309 = vmatpush1.bf16.msra.mxu0 0
    %310 = vmatprep.subr.bf16.mxu0 0
    %311 = vmatpush1.bf16.msra.mxu0 0
    %312 = vmatprep.subr.bf16.mxu0 0
    %313 = vmatpush1.bf16.msra.mxu0 0
    %314 = vmatprep.subr.bf16.mxu0 0
    %315 = vmatpush1.bf16.msra.mxu0 0
    %316 = vmatprep.subr.bf16.mxu0 0
    %317 = vmatpush1.bf16.msra.mxu0 0
    %318 = vmatprep.subr.bf16.mxu0 0
    %319 = vmatpush1.bf16.msra.mxu0 0
    %320 = vmatprep.subr.bf16.mxu0 0
    %321 = vmatpush1.bf16.msra.mxu0 0
    %322 = vmatprep.subr.bf16.mxu0 0
    %323 = vmatpush1.bf16.msra.mxu0 0
    %324 = vmatprep.subr.bf16.mxu0 0
    %325 = vmatpush1.bf16.msra.mxu0 0
    %326 = vmatprep.subr.bf16.mxu0 0
    %327 = vmatpush1.bf16.msra.mxu0 0
    %328 = vmatprep.mubr.bf16.mxu0 0
    %329 = vmatmul.mubr.bf16.gmra.mrb[0].mxu0 %v294
    %v330 = vpop.f32.mrb[0].mxu0
    %v331 = vadd.f32 0.0, %v330
    %v332 = vpop.f32.mrb[0].mxu0
    %v333 = vpop.f32.mrb[0].mxu0
    %v334 = vadd.f32 0.0, %v333
    %v335 = vpop.f32.mrb[0].mxu0
    %336 = vdwg.mxu0
    %337 = vrot.lane.b32.xlu0 %v214, 120
    %v338 = vpop.permute.xlu0 %337
    %339 = vrot.lane.b32.xlu0 %v214, 88
    %v340 = vpop.permute.xlu0 %339
    %v342 = vsel %vm218, %v338, 0
    %v345 = vsel %vm218, %v340, 0
    %347 = vmatprep.subr.bf16.mxu0 0
    %348 = vmatpush1.bf16.xpose.msra.mxu0 %v345
    %349 = vmatprep.subr.bf16.mxu0 0
    %350 = vmatpush1.bf16.xpose.msra.mxu0 0
    %351 = vmatprep.subr.bf16.mxu0 0
    %352 = vmatpush1.bf16.xpose.msra.mxu0 0
    %353 = vmatprep.subr.bf16.mxu0 0
    %354 = vmatpush1.bf16.xpose.msra.mxu0 0
    %355 = vmatprep.subr.bf16.mxu0 0
    %356 = vmatpush1.bf16.xpose.msra.mxu0 0
    %357 = vmatprep.subr.bf16.mxu0 0
    %358 = vmatpush1.bf16.xpose.msra.mxu0 0
    %359 = vmatprep.subr.bf16.mxu0 0
    %360 = vmatpush1.bf16.xpose.msra.mxu0 0
    %361 = vmatprep.subr.bf16.mxu0 0
    %362 = vmatpush1.bf16.xpose.msra.mxu0 0
    %363 = vmatprep.subr.bf16.mxu0 0
    %364 = vmatpush1.bf16.xpose.msra.mxu0 0
    %365 = vmatprep.subr.bf16.mxu0 0
    %366 = vmatpush1.bf16.xpose.msra.mxu0 0
    %367 = vmatprep.subr.bf16.mxu0 0
    %368 = vmatpush1.bf16.xpose.msra.mxu0 0
    %369 = vmatprep.subr.bf16.mxu0 0
    %370 = vmatpush1.bf16.xpose.msra.mxu0 0
    %371 = vmatprep.subr.bf16.mxu0 0
    %372 = vmatpush1.bf16.xpose.msra.mxu0 0
    %373 = vmatprep.subr.bf16.mxu0 0
    %374 = vmatpush1.bf16.xpose.msra.mxu0 0
    %375 = vmatprep.subr.bf16.mxu0 0
    %376 = vmatpush1.bf16.xpose.msra.mxu0 0
    %377 = vmatprep.subr.bf16.mxu0 0
    %378 = vmatpush1.bf16.xpose.msra.mxu0 0
    %379 = vmatprep.mubr.bf16.mxu0 0
    %380 = vmatmul.mubr.bf16.gmra.mrb[0].mxu0 %v342
    %v381 = vpop.f32.mrb[0].mxu0
    %v382 = vadd.f32 %v142, %v381
    %v383 = vpop.f32.mrb[0].mxu0
    %v384 = vpop.f32.mrb[0].mxu0
    %v385 = vadd.f32 %v143, %v384
    %v386 = vpop.f32.mrb[0].mxu0
    %387 = vdwg.mxu0
    %v388 = vsel %vm266, %v382, -inf
    %389 = vmax.xlane.f32.xlu0 %v388
    %v390 = vpop.xlane.xlu0 %389
    %v391 = vsel %vm266, %v385, -inf
    %392 = vmax.xlane.f32.xlu0 %v391
    %v393 = vpop.xlane.xlu0 %392
    %v394 = vsub.f32 %v382, %v390
    %v395 = vsub.f32 %v385, %v393
    %v396 = vmul.f32 %v394, 1.442695
    %v397 = vpow.pop %v396
    %v398 = vmul.f32 %v395, 1.442695
    %v399 = vpow.pop %v398
    %v400 = vsel %vm266, %v397, 0.0
    %401 = vadd.xlane.f32.xlu0 %v400
    %v402 = vpop.xlane.xlu0 %401
    %v403 = vsel %vm266, %v399, 0.0
    %404 = vadd.xlane.f32.xlu0 %v403
    %v405 = vpop.xlane.xlu0 %404
    %v406 = vrcp.pop %v402
    %v407 = vmul.f32 %v397, %v406
    %v408 = vrcp.pop %v405
    %v409 = vmul.f32 %v399, %v408
    %v410 = vpack.c.bf16 %v409, %v407
    %411 = vrot.lane.b32.xlu0 %v214, 56
    %v412 = vpop.permute.xlu0 %411
    %v415 = vsel %vm266, %v410, 0
    %417 = vmatprep.subr.bf16.mxu0 0
    %418 = vmatpush1.bf16.msra.mxu0 %v412
    %419 = vmatprep.subr.bf16.mxu0 0
    %420 = vmatpush1.bf16.msra.mxu0 0
    %421 = vmatprep.subr.bf16.mxu0 0
    %422 = vmatpush1.bf16.msra.mxu0 0
    %423 = vmatprep.subr.bf16.mxu0 0
    %424 = vmatpush1.bf16.msra.mxu0 0
    %425 = vmatprep.subr.bf16.mxu0 0
    %426 = vmatpush1.bf16.msra.mxu0 0
    %427 = vmatprep.subr.bf16.mxu0 0
    %428 = vmatpush1.bf16.msra.mxu0 0
    %429 = vmatprep.subr.bf16.mxu0 0
    %430 = vmatpush1.bf16.msra.mxu0 0
    %431 = vmatprep.subr.bf16.mxu0 0
    %432 = vmatpush1.bf16.msra.mxu0 0
    %433 = vmatprep.subr.bf16.mxu0 0
    %434 = vmatpush1.bf16.msra.mxu0 0
    %435 = vmatprep.subr.bf16.mxu0 0
    %436 = vmatpush1.bf16.msra.mxu0 0
    %437 = vmatprep.subr.bf16.mxu0 0
    %438 = vmatpush1.bf16.msra.mxu0 0
    %439 = vmatprep.subr.bf16.mxu0 0
    %440 = vmatpush1.bf16.msra.mxu0 0
    %441 = vmatprep.subr.bf16.mxu0 0
    %442 = vmatpush1.bf16.msra.mxu0 0
    %443 = vmatprep.subr.bf16.mxu0 0
    %444 = vmatpush1.bf16.msra.mxu0 0
    %445 = vmatprep.subr.bf16.mxu0 0
    %446 = vmatpush1.bf16.msra.mxu0 0
    %447 = vmatprep.subr.bf16.mxu0 0
    %448 = vmatpush1.bf16.msra.mxu0 0
    %449 = vmatprep.mubr.bf16.mxu0 0
    %450 = vmatmul.mubr.bf16.gmra.mrb[0].mxu0 %v415
    %v451 = vpop.f32.mrb[0].mxu0
    %v452 = vadd.f32 0.0, %v451
    %v453 = vpop.f32.mrb[0].mxu0
    %v454 = vpop.f32.mrb[0].mxu0
    %v455 = vadd.f32 0.0, %v454
    %v456 = vpop.f32.mrb[0].mxu0
    %457 = vdwg.mxu0
    %458 = vrot.lane.b32.xlu0 %v214, 112
    %v459 = vpop.permute.xlu0 %458
    %460 = vrot.lane.b32.xlu0 %v214, 80
    %v461 = vpop.permute.xlu0 %460
    %v463 = vsel %vm218, %v459, 0
    %v466 = vsel %vm218, %v461, 0
    %468 = vmatprep.subr.bf16.mxu0 0
    %469 = vmatpush1.bf16.xpose.msra.mxu0 %v466
    %470 = vmatprep.subr.bf16.mxu0 0
    %471 = vmatpush1.bf16.xpose.msra.mxu0 0
    %472 = vmatprep.subr.bf16.mxu0 0
    %473 = vmatpush1.bf16.xpose.msra.mxu0 0
    %474 = vmatprep.subr.bf16.mxu0 0
    %475 = vmatpush1.bf16.xpose.msra.mxu0 0
    %476 = vmatprep.subr.bf16.mxu0 0
    %477 = vmatpush1.bf16.xpose.msra.mxu0 0
    %478 = vmatprep.subr.bf16.mxu0 0
    %479 = vmatpush1.bf16.xpose.msra.mxu0 0
    %480 = vmatprep.subr.bf16.mxu0 0
    %481 = vmatpush1.bf16.xpose.msra.mxu0 0
    %482 = vmatprep.subr.bf16.mxu0 0
    %483 = vmatpush1.bf16.xpose.msra.mxu0 0
    %484 = vmatprep.subr.bf16.mxu0 0
    %485 = vmatpush1.bf16.xpose.msra.mxu0 0
    %486 = vmatprep.subr.bf16.mxu0 0
    %487 = vmatpush1.bf16.xpose.msra.mxu0 0
    %488 = vmatprep.subr.bf16.mxu0 0
    %489 = vmatpush1.bf16.xpose.msra.mxu0 0
    %490 = vmatprep.subr.bf16.mxu0 0
    %491 = vmatpush1.bf16.xpose.msra.mxu0 0
    %492 = vmatprep.subr.bf16.mxu0 0
    %493 = vmatpush1.bf16.xpose.msra.mxu0 0
    %494 = vmatprep.subr.bf16.mxu0 0
    %495 = vmatpush1.bf16.xpose.msra.mxu0 0
    %496 = vmatprep.subr.bf16.mxu0 0
    %497 = vmatpush1.bf16.xpose.msra.mxu0 0
    %498 = vmatprep.subr.bf16.mxu0 0
    %499 = vmatpush1.bf16.xpose.msra.mxu0 0
    %500 = vmatprep.mubr.bf16.mxu0 0
    %501 = vmatmul.mubr.bf16.gmra.mrb[0].mxu0 %v463
    %v502 = vpop.f32.mrb[0].mxu0
    %v503 = vadd.f32 %v142, %v502
    %v504 = vpop.f32.mrb[0].mxu0
    %v505 = vpop.f32.mrb[0].mxu0
    %v506 = vadd.f32 %v143, %v505
    %v507 = vpop.f32.mrb[0].mxu0
    %508 = vdwg.mxu0
    %v509 = vsel %vm266, %v503, -inf
    %510 = vmax.xlane.f32.xlu0 %v509
    %v511 = vpop.xlane.xlu0 %510
    %v512 = vsel %vm266, %v506, -inf
    %513 = vmax.xlane.f32.xlu0 %v512
    %v514 = vpop.xlane.xlu0 %513
    %v515 = vsub.f32 %v503, %v511
    %v516 = vsub.f32 %v506, %v514
    %v517 = vmul.f32 %v515, 1.442695
    %v518 = vpow.pop %v517
    %v519 = vmul.f32 %v516, 1.442695
    %v520 = vpow.pop %v519
    %v521 = vsel %vm266, %v518, 0.0
    %522 = vadd.xlane.f32.xlu0 %v521
    %v523 = vpop.xlane.xlu0 %522
    %v524 = vsel %vm266, %v520, 0.0
    %525 = vadd.xlane.f32.xlu0 %v524
    %v526 = vpop.xlane.xlu0 %525
    %v527 = vrcp.pop %v523
    %v528 = vmul.f32 %v518, %v527
    %v529 = vrcp.pop %v526
    %v530 = vmul.f32 %v520, %v529
    %v531 = vpack.c.bf16 %v530, %v528
    %532 = vrot.lane.b32.xlu0 %v214, 48
    %v533 = vpop.permute.xlu0 %532
    %v536 = vsel %vm266, %v531, 0
    %538 = vmatprep.subr.bf16.mxu0 0
    %539 = vmatpush1.bf16.msra.mxu0 %v533
    %540 = vmatprep.subr.bf16.mxu0 0
    %541 = vmatpush1.bf16.msra.mxu0 0
    %542 = vmatprep.subr.bf16.mxu0 0
    %543 = vmatpush1.bf16.msra.mxu0 0
    %544 = vmatprep.subr.bf16.mxu0 0
    %545 = vmatpush1.bf16.msra.mxu0 0
    %546 = vmatprep.subr.bf16.mxu0 0
    %547 = vmatpush1.bf16.msra.mxu0 0
    %548 = vmatprep.subr.bf16.mxu0 0
    %549 = vmatpush1.bf16.msra.mxu0 0
    %550 = vmatprep.subr.bf16.mxu0 0
    %551 = vmatpush1.bf16.msra.mxu0 0
    %552 = vmatprep.subr.bf16.mxu0 0
    %553 = vmatpush1.bf16.msra.mxu0 0
    %554 = vmatprep.subr.bf16.mxu0 0
    %555 = vmatpush1.bf16.msra.mxu0 0
    %556 = vmatprep.subr.bf16.mxu0 0
    %557 = vmatpush1.bf16.msra.mxu0 0
    %558 = vmatprep.subr.bf16.mxu0 0
    %559 = vmatpush1.bf16.msra.mxu0 0
    %560 = vmatprep.subr.bf16.mxu0 0
    %561 = vmatpush1.bf16.msra.mxu0 0
    %562 = vmatprep.subr.bf16.mxu0 0
    %563 = vmatpush1.bf16.msra.mxu0 0
    %564 = vmatprep.subr.bf16.mxu0 0
    %565 = vmatpush1.bf16.msra.mxu0 0
    %566 = vmatprep.subr.bf16.mxu0 0
    %567 = vmatpush1.bf16.msra.mxu0 0
    %568 = vmatprep.subr.bf16.mxu0 0
    %569 = vmatpush1.bf16.msra.mxu0 0
    %570 = vmatprep.mubr.bf16.mxu0 0
    %571 = vmatmul.mubr.bf16.gmra.mrb[0].mxu0 %v536
    %v572 = vpop.f32.mrb[0].mxu0
    %v573 = vadd.f32 0.0, %v572
    %v574 = vpop.f32.mrb[0].mxu0
    %v575 = vpop.f32.mrb[0].mxu0
    %v576 = vadd.f32 0.0, %v575
    %v577 = vpop.f32.mrb[0].mxu0
    %578 = vdwg.mxu0
    %579 = vrot.lane.b32.xlu0 %v214, 104
    %v580 = vpop.permute.xlu0 %579
    %581 = vrot.lane.b32.xlu0 %v214, 72
    %v582 = vpop.permute.xlu0 %581
    %v584 = vsel %vm218, %v580, 0
    %v587 = vsel %vm218, %v582, 0
    %589 = vmatprep.subr.bf16.mxu0 0
    %590 = vmatpush1.bf16.xpose.msra.mxu0 %v587
    %591 = vmatprep.subr.bf16.mxu0 0
    %592 = vmatpush1.bf16.xpose.msra.mxu0 0
    %593 = vmatprep.subr.bf16.mxu0 0
    %594 = vmatpush1.bf16.xpose.msra.mxu0 0
    %595 = vmatprep.subr.bf16.mxu0 0
    %596 = vmatpush1.bf16.xpose.msra.mxu0 0
    %597 = vmatprep.subr.bf16.mxu0 0
    %598 = vmatpush1.bf16.xpose.msra.mxu0 0
    %599 = vmatprep.subr.bf16.mxu0 0
    %600 = vmatpush1.bf16.xpose.msra.mxu0 0
    %601 = vmatprep.subr.bf16.mxu0 0
    %602 = vmatpush1.bf16.xpose.msra.mxu0 0
    %603 = vmatprep.subr.bf16.mxu0 0
    %604 = vmatpush1.bf16.xpose.msra.mxu0 0
    %605 = vmatprep.subr.bf16.mxu0 0
    %606 = vmatpush1.bf16.xpose.msra.mxu0 0
    %607 = vmatprep.subr.bf16.mxu0 0
    %608 = vmatpush1.bf16.xpose.msra.mxu0 0
    %609 = vmatprep.subr.bf16.mxu0 0
    %610 = vmatpush1.bf16.xpose.msra.mxu0 0
    %611 = vmatprep.subr.bf16.mxu0 0
    %612 = vmatpush1.bf16.xpose.msra.mxu0 0
    %613 = vmatprep.subr.bf16.mxu0 0
    %614 = vmatpush1.bf16.xpose.msra.mxu0 0
    %615 = vmatprep.subr.bf16.mxu0 0
    %616 = vmatpush1.bf16.xpose.msra.mxu0 0
    %617 = vmatprep.subr.bf16.mxu0 0
    %618 = vmatpush1.bf16.xpose.msra.mxu0 0
    %619 = vmatprep.subr.bf16.mxu0 0
    %620 = vmatpush1.bf16.xpose.msra.mxu0 0
    %621 = vmatprep.mubr.bf16.mxu0 0
    %622 = vmatmul.mubr.bf16.gmra.mrb[0].mxu0 %v584
    %v623 = vpop.f32.mrb[0].mxu0
    %v624 = vadd.f32 %v142, %v623
    %v625 = vpop.f32.mrb[0].mxu0
    %v626 = vpop.f32.mrb[0].mxu0
    %v627 = vadd.f32 %v143, %v626
    %v628 = vpop.f32.mrb[0].mxu0
    %629 = vdwg.mxu0
    %v630 = vsel %vm266, %v624, -inf
    %631 = vmax.xlane.f32.xlu0 %v630
    %v632 = vpop.xlane.xlu0 %631
    %v633 = vsel %vm266, %v627, -inf
    %634 = vmax.xlane.f32.xlu0 %v633
    %v635 = vpop.xlane.xlu0 %634
    %v636 = vsub.f32 %v624, %v632
    %v637 = vsub.f32 %v627, %v635
    %v638 = vmul.f32 %v636, 1.442695
    %v639 = vpow.pop %v638
    %v640 = vmul.f32 %v637, 1.442695
    %v641 = vpow.pop %v640
    %v642 = vsel %vm266, %v639, 0.0
    %643 = vadd.xlane.f32.xlu0 %v642
    %v644 = vpop.xlane.xlu0 %643
    %v645 = vsel %vm266, %v641, 0.0
    %646 = vadd.xlane.f32.xlu0 %v645
    %v647 = vpop.xlane.xlu0 %646
    %v648 = vrcp.pop %v644
    %v649 = vmul.f32 %v639, %v648
    %v650 = vrcp.pop %v647
    %v651 = vmul.f32 %v641, %v650
    %v652 = vpack.c.bf16 %v651, %v649
    %653 = vrot.lane.b32.xlu0 %v214, 40
    %v654 = vpop.permute.xlu0 %653
    %v657 = vsel %vm266, %v652, 0
    %659 = vmatprep.subr.bf16.mxu0 0
    %660 = vmatpush1.bf16.msra.mxu0 %v654
    %661 = vmatprep.subr.bf16.mxu0 0
    %662 = vmatpush1.bf16.msra.mxu0 0
    %663 = vmatprep.subr.bf16.mxu0 0
    %664 = vmatpush1.bf16.msra.mxu0 0
    %665 = vmatprep.subr.bf16.mxu0 0
    %666 = vmatpush1.bf16.msra.mxu0 0
    %667 = vmatprep.subr.bf16.mxu0 0
    %668 = vmatpush1.bf16.msra.mxu0 0
    %669 = vmatprep.subr.bf16.mxu0 0
    %670 = vmatpush1.bf16.msra.mxu0 0
    %671 = vmatprep.subr.bf16.mxu0 0
    %672 = vmatpush1.bf16.msra.mxu0 0
    %673 = vmatprep.subr.bf16.mxu0 0
    %674 = vmatpush1.bf16.msra.mxu0 0
    %675 = vmatprep.subr.bf16.mxu0 0
    %676 = vmatpush1.bf16.msra.mxu0 0
    %677 = vmatprep.subr.bf16.mxu0 0
    %678 = vmatpush1.bf16.msra.mxu0 0
    %679 = vmatprep.subr.bf16.mxu0 0
    %680 = vmatpush1.bf16.msra.mxu0 0
    %681 = vmatprep.subr.bf16.mxu0 0
    %682 = vmatpush1.bf16.msra.mxu0 0
    %683 = vmatprep.subr.bf16.mxu0 0
    %684 = vmatpush1.bf16.msra.mxu0 0
    %685 = vmatprep.subr.bf16.mxu0 0
    %686 = vmatpush1.bf16.msra.mxu0 0
    %687 = vmatprep.subr.bf16.mxu0 0
    %688 = vmatpush1.bf16.msra.mxu0 0
    %689 = vmatprep.subr.bf16.mxu0 0
    %690 = vmatpush1.bf16.msra.mxu0 0
    %691 = vmatprep.mubr.bf16.mxu0 0
    %692 = vmatmul.mubr.bf16.gmra.mrb[0].mxu0 %v657
    %v693 = vpop.f32.mrb[0].mxu0
    %v694 = vadd.f32 0.0, %v693
    %v695 = vpop.f32.mrb[0].mxu0
    %v696 = vpop.f32.mrb[0].mxu0
    %v697 = vadd.f32 0.0, %v696
    %v698 = vpop.f32.mrb[0].mxu0
    %699 = vdwg.mxu0
    %702 = vrot.lane.b32.xlu0 %v452, 8
    %v703 = vpop.permute.xlu0 %702
    %704 = vrot.lane.b32.xlu0 %v455, 8
    %v705 = vpop.permute.xlu0 %704
    %710 = vrot.lane.b32.xlu0 %v573, 16
    %v711 = vpop.permute.xlu0 %710
    %712 = vrot.lane.b32.xlu0 %v576, 16
    %v713 = vpop.permute.xlu0 %712
    %718 = vrot.lane.b32.xlu0 %v694, 24
    %v719 = vpop.permute.xlu0 %718
    %720 = vrot.lane.b32.xlu0 %v697, 24
    %v721 = vpop.permute.xlu0 %720
    %v724 = vsel %vm218, %v331, %v703
    %v725 = vsel %vm218, %v334, %v705
    %v726 = vsel %vm266, %v724, %v711
    %v727 = vsel %vm266, %v725, %v713
    %vm728 = vcmask 195584
    %v729 = vsel %vm728, %v726, %v719
    %v730 = vsel %vm728, %v727, %v721
    %v731 = vpack.c.bf16 %v730, %v729
    %v732 = vld [vmem:[%s6] sm:$0xf]
    %v733 = vld [vmem:[%s6 + $0x4] sm:$0xf]
    %v734 = vld [vmem:[%s6 + $0x8] sm:$0xf]
    %v735 = vld [vmem:[%s6 + $0xc] sm:$0xf]
    %v736 = vlaneseq
    %v737 = vshrl.u32 %v736, 7
    %v738 = vsub.s32 0, %v737
    %v739 = vrot.slane %v144, %v738
    %v744 = vunpack.c.l.b16 %v732
    %v745 = vunpack.c.l.b16 %v733
    %v746 = vunpack.c.l.b16 %v734
    %v747 = vunpack.c.l.b16 %v735
    %v748 = vpack.c.b16 %v745, %v744
    %v749 = vpack.c.b16 %v747, %v746
    %v753 = vsel %vm169, %v731, 0
    %755 = vmatprep.subr.bf16.mxu0 0
    %756 = vmatpush1.bf16.msra.mxu0 %v748
    %757 = vmatprep.subr.bf16.mxu0 0
    %758 = vmatpush1.bf16.msra.mxu0 %v749
    %759 = vmatprep.subr.bf16.mxu0 0
    %760 = vmatpush1.bf16.msra.mxu0 0
    %761 = vmatprep.subr.bf16.mxu0 0
    %762 = vmatpush1.bf16.msra.mxu0 0
    %763 = vmatprep.subr.bf16.mxu0 0
    %764 = vmatpush1.bf16.msra.mxu0 0
    %765 = vmatprep.subr.bf16.mxu0 0
    %766 = vmatpush1.bf16.msra.mxu0 0
    %767 = vmatprep.subr.bf16.mxu0 0
    %768 = vmatpush1.bf16.msra.mxu0 0
    %769 = vmatprep.subr.bf16.mxu0 0
    %770 = vmatpush1.bf16.msra.mxu0 0
    %771 = vmatprep.subr.bf16.mxu0 0
    %772 = vmatpush1.bf16.msra.mxu0 0
    %773 = vmatprep.subr.bf16.mxu0 0
    %774 = vmatpush1.bf16.msra.mxu0 0
    %775 = vmatprep.subr.bf16.mxu0 0
    %776 = vmatpush1.bf16.msra.mxu0 0
    %777 = vmatprep.subr.bf16.mxu0 0
    %778 = vmatpush1.bf16.msra.mxu0 0
    %779 = vmatprep.subr.bf16.mxu0 0
    %780 = vmatpush1.bf16.msra.mxu0 0
    %781 = vmatprep.subr.bf16.mxu0 0
    %782 = vmatpush1.bf16.msra.mxu0 0
    %783 = vmatprep.subr.bf16.mxu0 0
    %784 = vmatpush1.bf16.msra.mxu0 0
    %785 = vmatprep.subr.bf16.mxu0 0
    %786 = vmatpush1.bf16.msra.mxu0 0
    %787 = vmatprep.mubr.bf16.mxu0 0
    %788 = vmatmul.mubr.bf16.gmra.mrb[0].mxu0 %v753
    %v789 = vpop.f32.mrb[0].mxu0
    %v790 = vadd.f32 %v739, %v789
    %v791 = vpop.f32.mrb[0].mxu0
    %v792 = vpop.f32.mrb[0].mxu0
    %v793 = vadd.f32 %v739, %v792
    %v794 = vpop.f32.mrb[0].mxu0
    %795 = vdwg.mxu0
    %v796 = vadd.f32 %v136, %v790
    %v797 = vadd.f32 %v139, %v793
    %v798 = vsel %vm169, %v796, 0.0
    %799 = vadd.xlane.f32.xlu0 %v798
    %v800 = vpop.xlane.xlu0 %799
    %v801 = vsel %vm169, %v797, 0.0
    %802 = vadd.xlane.f32.xlu0 %v801
    %v803 = vpop.xlane.xlu0 %802
    %v804 = vrcp.pop 32.0
    %v805 = vmul.f32 %v800, %v804
    %v806 = vmul.f32 %v803, %v804
    %v807 = vmul.f32 %v796, %v796
    %v808 = vmul.f32 %v797, %v797
    %v809 = vsel %vm169, %v807, 0.0
    %810 = vadd.xlane.f32.xlu0 %v809
    %v811 = vpop.xlane.xlu0 %810
    %v812 = vsel %vm169, %v808, 0.0
    %813 = vadd.xlane.f32.xlu0 %v812
    %v814 = vpop.xlane.xlu0 %813
    %v815 = vmul.f32 %v811, %v804
    %v816 = vmul.f32 %v814, %v804
    %v817 = vmul.f32 %v805, %v805
    %v818 = vmul.f32 %v806, %v806
    %v819 = vsub.f32 %v815, %v817
    %v820 = vsub.f32 %v816, %v818
    %v821 = vsub.f32 %v796, %v805
    %v822 = vsub.f32 %v797, %v806
    %v823 = vadd.f32 %v819, 1e-12
    %v824 = vadd.f32 %v820, 1e-12
    %v825 = vrsqrt.pop %v823
    %v826 = vrsqrt.pop %v824
    %v827 = vmul.f32 %v821, %v825
    %v828 = vmul.f32 %v822, %v826
    %v829 = vlaneseq
    %v830 = vshrl.u32 %v829, 7
    %v831 = vsub.s32 1, %v830
    %v832 = vrot.slane %v144, %v831
    %v833 = vmul.f32 %v827, %v832
    %v834 = vmul.f32 %v828, %v832
    %v835 = vlaneseq
    %v836 = vshrl.u32 %v835, 7
    %v837 = vsub.s32 2, %v836
    %v838 = vrot.slane %v144, %v837
    %v839 = vadd.f32 %v833, %v838
    %v840 = vadd.f32 %v834, %v838
    %v841 = vpack.c.bf16 %v840, %v839
    %v842 = vld [vmem:[%s7] sm:$0xf]
    %v843 = vld [vmem:[%s7 + $0x4] sm:$0xf]
    %v844 = vld [vmem:[%s7 + $0x8] sm:$0xf]
    %v845 = vld [vmem:[%s7 + $0xc] sm:$0xf]
    %v846 = vld [vmem:[%s8] sm:$0x1]
    %v848 = vlaneseq
    %v849 = vshrl.u32 %v848, 7
    %v850 = vsub.s32 0, %v849
    %v851 = vrot.slane %v846, %v850
    %v857 = vunpack.c.l.b16 %v842
    %v858 = vunpack.c.l.b16 %v843
    %v859 = vunpack.c.l.b16 %v844
    %v860 = vunpack.c.l.b16 %v845
    %v861 = vpack.c.b16 %v858, %v857
    %v862 = vpack.c.b16 %v860, %v859
    %v866 = vsel %vm169, %v841, 0
    %868 = vmatprep.subr.bf16.mxu0 0
    %869 = vmatpush1.bf16.msra.mxu0 %v861
    %870 = vmatprep.subr.bf16.mxu0 0
    %871 = vmatpush1.bf16.msra.mxu0 %v862
    %872 = vmatprep.subr.bf16.mxu0 0
    %873 = vmatpush1.bf16.msra.mxu0 0
    %874 = vmatprep.subr.bf16.mxu0 0
    %875 = vmatpush1.bf16.msra.mxu0 0
    %876 = vmatprep.subr.bf16.mxu0 0
    %877 = vmatpush1.bf16.msra.mxu0 0
    %878 = vmatprep.subr.bf16.mxu0 0
    %879 = vmatpush1.bf16.msra.mxu0 0
    %880 = vmatprep.subr.bf16.mxu0 0
    %881 = vmatpush1.bf16.msra.mxu0 0
    %882 = vmatprep.subr.bf16.mxu0 0
    %883 = vmatpush1.bf16.msra.mxu0 0
    %884 = vmatprep.subr.bf16.mxu0 0
    %885 = vmatpush1.bf16.msra.mxu0 0
    %886 = vmatprep.subr.bf16.mxu0 0
    %887 = vmatpush1.bf16.msra.mxu0 0
    %888 = vmatprep.subr.bf16.mxu0 0
    %889 = vmatpush1.bf16.msra.mxu0 0
    %890 = vmatprep.subr.bf16.mxu0 0
    %891 = vmatpush1.bf16.msra.mxu0 0
    %892 = vmatprep.subr.bf16.mxu0 0
    %893 = vmatpush1.bf16.msra.mxu0 0
    %894 = vmatprep.subr.bf16.mxu0 0
    %895 = vmatpush1.bf16.msra.mxu0 0
    %896 = vmatprep.subr.bf16.mxu0 0
    %897 = vmatpush1.bf16.msra.mxu0 0
    %898 = vmatprep.subr.bf16.mxu0 0
    %899 = vmatpush1.bf16.msra.mxu0 0
    %900 = vmatprep.mubr.bf16.mxu0 0
    %901 = vmatmul.mubr.bf16.gmra.mrb[0].mxu0 %v866
    %v902 = vpop.f32.mrb[0].mxu0
    %v903 = vadd.f32 %v851, %v902
    %v904 = vpop.f32.mrb[0].mxu0
    %v905 = vpop.f32.mrb[0].mxu0
    %v906 = vadd.f32 %v851, %v905
    %v907 = vpop.f32.mrb[0].mxu0
    %908 = vdwg.mxu0
    %v909 = vmul.f32 %v903, %v903
    %v910 = vmul.f32 %v906, %v906
    %v911 = vmul.f32 %v903, %v909
    %v912 = vmul.f32 %v906, %v910
    %v913 = vmul.f32 %v911, 0.044715
    %v914 = vmul.f32 %v912, 0.044715
    %v915 = vadd.f32 %v903, %v913
    %v916 = vadd.f32 %v906, %v914
    %v917 = vmul.f32 %v915, 0.7978846
    %v918 = vmul.f32 %v916, 0.7978846
    %v919 = vtanh.pop %v917
    %v920 = vtanh.pop %v918
    %v921 = vadd.f32 %v919, 1.0
    %v922 = vadd.f32 %v920, 1.0
    %v923 = vmul.f32 %v921, 0.5
    %v924 = vmul.f32 %v922, 0.5
    %v925 = vmul.f32 %v903, %v923
    %v926 = vmul.f32 %v906, %v924
    %v927 = vpack.c.bf16 %v926, %v925
    %v928 = vld [vmem:[%s9] sm:$0xf]
    %v929 = vld [vmem:[%s9 + $0x4] sm:$0xf]
    %v930 = vld [vmem:[%s9 + $0x8] sm:$0xf]
    %v931 = vld [vmem:[%s9 + $0xc] sm:$0xf]
    %v932 = vld [vmem:[%s9 + $0x10] sm:$0xf]
    %v933 = vld [vmem:[%s9 + $0x14] sm:$0xf]
    %v934 = vld [vmem:[%s9 + $0x18] sm:$0xf]
    %v935 = vld [vmem:[%s9 + $0x1c] sm:$0xf]
    %v936 = vlaneseq
    %v937 = vshrl.u32 %v936, 7
    %v938 = vsub.s32 3, %v937
    %v939 = vrot.slane %v144, %v938
    %v948 = vunpack.c.l.b16 %v928
    %v949 = vunpack.c.l.b16 %v929
    %v950 = vunpack.c.l.b16 %v930
    %v951 = vunpack.c.l.b16 %v931
    %v952 = vunpack.c.l.b16 %v932
    %v953 = vunpack.c.l.b16 %v933
    %v954 = vunpack.c.l.b16 %v934
    %v955 = vunpack.c.l.b16 %v935
    %v956 = vpack.c.b16 %v949, %v948
    %v957 = vpack.c.b16 %v951, %v950
    %v958 = vpack.c.b16 %v953, %v952
    %v959 = vpack.c.b16 %v955, %v954
    %vm964 = vcmask 523264
    %v966 = vsel %vm964, %v927, 0
    %968 = vmatprep.subr.bf16.mxu0 0
    %969 = vmatpush1.bf16.msra.mxu0 %v956
    %970 = vmatprep.subr.bf16.mxu0 0
    %971 = vmatpush1.bf16.msra.mxu0 %v957
    %972 = vmatprep.subr.bf16.mxu0 0
    %973 = vmatpush1.bf16.msra.mxu0 %v958
    %974 = vmatprep.subr.bf16.mxu0 0
    %975 = vmatpush1.bf16.msra.mxu0 %v959
    %976 = vmatprep.subr.bf16.mxu0 0
    %977 = vmatpush1.bf16.msra.mxu0 0
    %978 = vmatprep.subr.bf16.mxu0 0
    %979 = vmatpush1.bf16.msra.mxu0 0
    %980 = vmatprep.subr.bf16.mxu0 0
    %981 = vmatpush1.bf16.msra.mxu0 0
    %982 = vmatprep.subr.bf16.mxu0 0
    %983 = vmatpush1.bf16.msra.mxu0 0
    %984 = vmatprep.subr.bf16.mxu0 0
    %985 = vmatpush1.bf16.msra.mxu0 0
    %986 = vmatprep.subr.bf16.mxu0 0
    %987 = vmatpush1.bf16.msra.mxu0 0
    %988 = vmatprep.subr.bf16.mxu0 0
    %989 = vmatpush1.bf16.msra.mxu0 0
    %990 = vmatprep.subr.bf16.mxu0 0
    %991 = vmatpush1.bf16.msra.mxu0 0
    %992 = vmatprep.subr.bf16.mxu0 0
    %993 = vmatpush1.bf16.msra.mxu0 0
    %994 = vmatprep.subr.bf16.mxu0 0
    %995 = vmatpush1.bf16.msra.mxu0 0
    %996 = vmatprep.subr.bf16.mxu0 0
    %997 = vmatpush1.bf16.msra.mxu0 0
    %998 = vmatprep.subr.bf16.mxu0 0
    %999 = vmatpush1.bf16.msra.mxu0 0
    %1000 = vmatprep.mubr.bf16.mxu0 0
    %1001 = vmatmul.mubr.bf16.gmra.mrb[0].mxu0 %v966
    %v1002 = vpop.f32.mrb[0].mxu0
    %v1003 = vadd.f32 %v939, %v1002
    %v1004 = vpop.f32.mrb[0].mxu0
    %v1005 = vpop.f32.mrb[0].mxu0
    %v1006 = vadd.f32 %v939, %v1005
    %v1007 = vpop.f32.mrb[0].mxu0
    %1008 = vdwg.mxu0
    %v1009 = vadd.f32 %v839, %v1003
    %v1010 = vadd.f32 %v840, %v1006
    %v1011 = vsel %vm169, %v1009, 0.0
    %1012 = vadd.xlane.f32.xlu0 %v1011
    %v1013 = vpop.xlane.xlu0 %1012
    %v1014 = vsel %vm169, %v1010, 0.0
    %1015 = vadd.xlane.f32.xlu0 %v1014
    %v1016 = vpop.xlane.xlu0 %1015
    %v1017 = vmul.f32 %v1013, %v804
    %v1018 = vmul.f32 %v1016, %v804
    %v1019 = vmul.f32 %v1009, %v1009
    %v1020 = vmul.f32 %v1010, %v1010
    %v1021 = vsel %vm169, %v1019, 0.0
    %1022 = vadd.xlane.f32.xlu0 %v1021
    %v1023 = vpop.xlane.xlu0 %1022
    %v1024 = vsel %vm169, %v1020, 0.0
    %1025 = vadd.xlane.f32.xlu0 %v1024
    %v1026 = vpop.xlane.xlu0 %1025
    %v1027 = vmul.f32 %v1023, %v804
    %v1028 = vmul.f32 %v1026, %v804
    %v1029 = vmul.f32 %v1017, %v1017
    %v1030 = vmul.f32 %v1018, %v1018
    %v1031 = vsub.f32 %v1027, %v1029
    %v1032 = vsub.f32 %v1028, %v1030
    %v1033 = vsub.f32 %v1009, %v1017
    %v1034 = vsub.f32 %v1010, %v1018
    %v1035 = vadd.f32 %v1031, 1e-12
    %v1036 = vadd.f32 %v1032, 1e-12
    %v1037 = vrsqrt.pop %v1035
    %v1038 = vrsqrt.pop %v1036
    %v1039 = vmul.f32 %v1033, %v1037
    %v1040 = vmul.f32 %v1034, %v1038
    %v1041 = vlaneseq
    %v1042 = vshrl.u32 %v1041, 7
    %v1043 = vsub.s32 4, %v1042
    %v1044 = vrot.slane %v144, %v1043
    %v1045 = vmul.f32 %v1039, %v1044
    %v1046 = vmul.f32 %v1040, %v1044
    %v1047 = vlaneseq
    %v1048 = vshrl.u32 %v1047, 7
    %v1049 = vsub.s32 5, %v1048
    %v1050 = vrot.slane %v144, %v1049
    %v1051 = vadd.f32 %v1045, %v1050
    %v1052 = vadd.f32 %v1046, %v1050
    %s1053 = scalar_lea.vmem %s10, 8
    %v1054 = vld [vmem:[%s1053] sm:$0x3f]
    %v1055 = vpack.c.bf16 %v1052, %v1051
    %s1056 = scalar_lea.vmem %s4, 16
    %v1057 = vld [vmem:[%s1056] sm:$0xf]
    %v1058 = vld [vmem:[%s1056 + $0x4] sm:$0xf]
    %v1059 = vld [vmem:[%s1056 + $0x8] sm:$0xf]
    %v1060 = vld [vmem:[%s1056 + $0xc] sm:$0xf]
    %s1061 = scalar_lea.vmem %s5, 1
    %v1062 = vld [vmem:[%s1061] sm:$0x1]
    %v1064 = vlaneseq
    %v1065 = vshrl.u32 %v1064, 7
    %v1066 = vsub.s32 0, %v1065
    %v1067 = vrot.slane %v1062, %v1066
    %v1073 = vunpack.c.l.b16 %v1057
    %v1074 = vunpack.c.l.b16 %v1058
    %v1075 = vunpack.c.l.b16 %v1059
    %v1076 = vunpack.c.l.b16 %v1060
    %v1077 = vpack.c.b16 %v1074, %v1073
    %v1078 = vpack.c.b16 %v1076, %v1075
    %v1082 = vsel %vm169, %v1055, 0
    %1084 = vmatprep.subr.bf16.mxu0 0
    %1085 = vmatpush1.bf16.msra.mxu0 %v1077
    %1086 = vmatprep.subr.bf16.mxu0 0
    %1087 = vmatpush1.bf16.msra.mxu0 %v1078
    %1088 = vmatprep.subr.bf16.mxu0 0
    %1089 = vmatpush1.bf16.msra.mxu0 0
    %1090 = vmatprep.subr.bf16.mxu0 0
    %1091 = vmatpush1.bf16.msra.mxu0 0
    %1092 = vmatprep.subr.bf16.mxu0 0
    %1093 = vmatpush1.bf16.msra.mxu0 0
    %1094 = vmatprep.subr.bf16.mxu0 0
    %1095 = vmatpush1.bf16.msra.mxu0 0
    %1096 = vmatprep.subr.bf16.mxu0 0
    %1097 = vmatpush1.bf16.msra.mxu0 0
    %1098 = vmatprep.subr.bf16.mxu0 0
    %1099 = vmatpush1.bf16.msra.mxu0 0
    %1100 = vmatprep.subr.bf16.mxu0 0
    %1101 = vmatpush1.bf16.msra.mxu0 0
    %1102 = vmatprep.subr.bf16.mxu0 0
    %1103 = vmatpush1.bf16.msra.mxu0 0
    %1104 = vmatprep.subr.bf16.mxu0 0
    %1105 = vmatpush1.bf16.msra.mxu0 0
    %1106 = vmatprep.subr.bf16.mxu0 0
    %1107 = vmatpush1.bf16.msra.mxu0 0
    %1108 = vmatprep.subr.bf16.mxu0 0
    %1109 = vmatpush1.bf16.msra.mxu0 0
    %1110 = vmatprep.subr.bf16.mxu0 0
    %1111 = vmatpush1.bf16.msra.mxu0 0
    %1112 = vmatprep.subr.bf16.mxu0 0
    %1113 = vmatpush1.bf16.msra.mxu0 0
    %1114 = vmatprep.subr.bf16.mxu0 0
    %1115 = vmatpush1.bf16.msra.mxu0 0
    %1116 = vmatprep.mubr.bf16.mxu0 0
    %1117 = vmatmul.mubr.bf16.gmra.mrb[0].mxu0 %v1082
    %v1118 = vpop.f32.mrb[0].mxu0
    %v1119 = vadd.f32 %v1067, %v1118
    %v1120 = vpop.f32.mrb[0].mxu0
    %v1121 = vpop.f32.mrb[0].mxu0
    %v1122 = vadd.f32 %v1067, %v1121
    %v1123 = vpop.f32.mrb[0].mxu0
    %1124 = vdwg.mxu0
    %v1125 = vpack.c.bf16 %v1122, %v1119
    %1127 = vrot.lane.b32.xlu0 %v1125, 96
    %v1128 = vpop.permute.xlu0 %1127
    %v1130 = vsel %vm218, %v1125, 0
    %v1133 = vsel %vm218, %v1128, 0
    %1135 = vmatprep.subr.bf16.mxu0 0
    %1136 = vmatpush1.bf16.xpose.msra.mxu0 %v1133
    %1137 = vmatprep.subr.bf16.mxu0 0
    %1138 = vmatpush1.bf16.xpose.msra.mxu0 0
    %1139 = vmatprep.subr.bf16.mxu0 0
    %1140 = vmatpush1.bf16.xpose.msra.mxu0 0
    %1141 = vmatprep.subr.bf16.mxu0 0
    %1142 = vmatpush1.bf16.xpose.msra.mxu0 0
    %1143 = vmatprep.subr.bf16.mxu0 0
    %1144 = vmatpush1.bf16.xpose.msra.mxu0 0
    %1145 = vmatprep.subr.bf16.mxu0 0
    %1146 = vmatpush1.bf16.xpose.msra.mxu0 0
    %1147 = vmatprep.subr.bf16.mxu0 0
    %1148 = vmatpush1.bf16.xpose.msra.mxu0 0
    %1149 = vmatprep.subr.bf16.mxu0 0
    %1150 = vmatpush1.bf16.xpose.msra.mxu0 0
    %1151 = vmatprep.subr.bf16.mxu0 0
    %1152 = vmatpush1.bf16.xpose.msra.mxu0 0
    %1153 = vmatprep.subr.bf16.mxu0 0
    %1154 = vmatpush1.bf16.xpose.msra.mxu0 0
    %1155 = vmatprep.subr.bf16.mxu0 0
    %1156 = vmatpush1.bf16.xpose.msra.mxu0 0
    %1157 = vmatprep.subr.bf16.mxu0 0
    %1158 = vmatpush1.bf16.xpose.msra.mxu0 0
    %1159 = vmatprep.subr.bf16.mxu0 0
    %1160 = vmatpush1.bf16.xpose.msra.mxu0 0
    %1161 = vmatprep.subr.bf16.mxu0 0
    %1162 = vmatpush1.bf16.xpose.msra.mxu0 0
    %1163 = vmatprep.subr.bf16.mxu0 0
    %1164 = vmatpush1.bf16.xpose.msra.mxu0 0
    %1165 = vmatprep.subr.bf16.mxu0 0
    %1166 = vmatpush1.bf16.xpose.msra.mxu0 0
    %1167 = vmatprep.mubr.bf16.mxu0 0
    %1168 = vmatmul.mubr.bf16.gmra.mrb[0].mxu0 %v1130
    %v1169 = vpop.f32.mrb[0].mxu0
    %v1170 = vadd.f32 %v142, %v1169
    %v1171 = vpop.f32.mrb[0].mxu0
    %v1172 = vpop.f32.mrb[0].mxu0
    %v1173 = vadd.f32 %v143, %v1172
    %v1174 = vpop.f32.mrb[0].mxu0
    %1175 = vdwg.mxu0
    %v1176 = vsel %vm266, %v1170, -inf
    %1177 = vmax.xlane.f32.xlu0 %v1176
    %v1178 = vpop.xlane.xlu0 %1177
    %v1179 = vsel %vm266, %v1173, -inf
    %1180 = vmax.xlane.f32.xlu0 %v1179
    %v1181 = vpop.xlane.xlu0 %1180
    %v1182 = vsub.f32 %v1170, %v1178
    %v1183 = vsub.f32 %v1173, %v1181
    %v1184 = vmul.f32 %v1182, 1.442695
    %v1185 = vpow.pop %v1184
    %v1186 = vmul.f32 %v1183, 1.442695
    %v1187 = vpow.pop %v1186
    %v1188 = vsel %vm266, %v1185, 0.0
    %1189 = vadd.xlane.f32.xlu0 %v1188
    %v1190 = vpop.xlane.xlu0 %1189
    %v1191 = vsel %vm266, %v1187, 0.0
    %1192 = vadd.xlane.f32.xlu0 %v1191
    %v1193 = vpop.xlane.xlu0 %1192
    %v1194 = vrcp.pop %v1190
    %v1195 = vmul.f32 %v1185, %v1194
    %v1196 = vrcp.pop %v1193
    %v1197 = vmul.f32 %v1187, %v1196
    %v1198 = vpack.c.bf16 %v1197, %v1195
    %1199 = vrot.lane.b32.xlu0 %v1125, 64
    %v1200 = vpop.permute.xlu0 %1199
    %v1203 = vsel %vm266, %v1198, 0
    %1205 = vmatprep.subr.bf16.mxu0 0
    %1206 = vmatpush1.bf16.msra.mxu0 %v1200
    %1207 = vmatprep.subr.bf16.mxu0 0
    %1208 = vmatpush1.bf16.msra.mxu0 0
    %1209 = vmatprep.subr.bf16.mxu0 0
    %1210 = vmatpush1.bf16.msra.mxu0 0
    %1211 = vmatprep.subr.bf16.mxu0 0
    %1212 = vmatpush1.bf16.msra.mxu0 0
    %1213 = vmatprep.subr.bf16.mxu0 0
    %1214 = vmatpush1.bf16.msra.mxu0 0
    %1215 = vmatprep.subr.bf16.mxu0 0
    %1216 = vmatpush1.bf16.msra.mxu0 0
    %1217 = vmatprep.subr.bf16.mxu0 0
    %1218 = vmatpush1.bf16.msra.mxu0 0
    %1219 = vmatprep.subr.bf16.mxu0 0
    %1220 = vmatpush1.bf16.msra.mxu0 0
    %1221 = vmatprep.subr.bf16.mxu0 0
    %1222 = vmatpush1.bf16.msra.mxu0 0
    %1223 = vmatprep.subr.bf16.mxu0 0
    %1224 = vmatpush1.bf16.msra.mxu0 0
    %1225 = vmatprep.subr.bf16.mxu0 0
    %1226 = vmatpush1.bf16.msra.mxu0 0
    %1227 = vmatprep.subr.bf16.mxu0 0
    %1228 = vmatpush1.bf16.msra.mxu0 0
    %1229 = vmatprep.subr.bf16.mxu0 0
    %1230 = vmatpush1.bf16.msra.mxu0 0
    %1231 = vmatprep.subr.bf16.mxu0 0
    %1232 = vmatpush1.bf16.msra.mxu0 0
    %1233 = vmatprep.subr.bf16.mxu0 0
    %1234 = vmatpush1.bf16.msra.mxu0 0
    %1235 = vmatprep.subr.bf16.mxu0 0
    %1236 = vmatpush1.bf16.msra.mxu0 0
    %1237 = vmatprep.mubr.bf16.mxu0 0
    %1238 = vmatmul.mubr.bf16.gmra.mrb[0].mxu0 %v1203
    %v1239 = vpop.f32.mrb[0].mxu0
    %v1240 = vadd.f32 0.0, %v1239
    %v1241 = vpop.f32.mrb[0].mxu0
    %v1242 = vpop.f32.mrb[0].mxu0
    %v1243 = vadd.f32 0.0, %v1242
    %v1244 = vpop.f32.mrb[0].mxu0
    %1245 = vdwg.mxu0
    %1246 = vrot.lane.b32.xlu0 %v1125, 120
    %v1247 = vpop.permute.xlu0 %1246
    %1248 = vrot.lane.b32.xlu0 %v1125, 88
    %v1249 = vpop.permute.xlu0 %1248
    %v1251 = vsel %vm218, %v1247, 0
    %v1254 = vsel %vm218, %v1249, 0
    %1256 = vmatprep.subr.bf16.mxu0 0
    %1257 = vmatpush1.bf16.xpose.msra.mxu0 %v1254
    %1258 = vmatprep.subr.bf16.mxu0 0
    %1259 = vmatpush1.bf16.xpose.msra.mxu0 0
    %1260 = vmatprep.subr.bf16.mxu0 0
    %1261 = vmatpush1.bf16.xpose.msra.mxu0 0
    %1262 = vmatprep.subr.bf16.mxu0 0
    %1263 = vmatpush1.bf16.xpose.msra.mxu0 0
    %1264 = vmatprep.subr.bf16.mxu0 0
    %1265 = vmatpush1.bf16.xpose.msra.mxu0 0
    %1266 = vmatprep.subr.bf16.mxu0 0
    %1267 = vmatpush1.bf16.xpose.msra.mxu0 0
    %1268 = vmatprep.subr.bf16.mxu0 0
    %1269 = vmatpush1.bf16.xpose.msra.mxu0 0
    %1270 = vmatprep.subr.bf16.mxu0 0
    %1271 = vmatpush1.bf16.xpose.msra.mxu0 0
    %1272 = vmatprep.subr.bf16.mxu0 0
    %1273 = vmatpush1.bf16.xpose.msra.mxu0 0
    %1274 = vmatprep.subr.bf16.mxu0 0
    %1275 = vmatpush1.bf16.xpose.msra.mxu0 0
    %1276 = vmatprep.subr.bf16.mxu0 0
    %1277 = vmatpush1.bf16.xpose.msra.mxu0 0
    %1278 = vmatprep.subr.bf16.mxu0 0
    %1279 = vmatpush1.bf16.xpose.msra.mxu0 0
    %1280 = vmatprep.subr.bf16.mxu0 0
    %1281 = vmatpush1.bf16.xpose.msra.mxu0 0
    %1282 = vmatprep.subr.bf16.mxu0 0
    %1283 = vmatpush1.bf16.xpose.msra.mxu0 0
    %1284 = vmatprep.subr.bf16.mxu0 0
    %1285 = vmatpush1.bf16.xpose.msra.mxu0 0
    %1286 = vmatprep.subr.bf16.mxu0 0
    %1287 = vmatpush1.bf16.xpose.msra.mxu0 0
    %1288 = vmatprep.mubr.bf16.mxu0 0
    %1289 = vmatmul.mubr.bf16.gmra.mrb[0].mxu0 %v1251
    %v1290 = vpop.f32.mrb[0].mxu0
    %v1291 = vadd.f32 %v142, %v1290
    %v1292 = vpop.f32.mrb[0].mxu0
    %v1293 = vpop.f32.mrb[0].mxu0
    %v1294 = vadd.f32 %v143, %v1293
    %v1295 = vpop.f32.mrb[0].mxu0
    %1296 = vdwg.mxu0
    %v1297 = vsel %vm266, %v1291, -inf
    %1298 = vmax.xlane.f32.xlu0 %v1297
    %v1299 = vpop.xlane.xlu0 %1298
    %v1300 = vsel %vm266, %v1294, -inf
    %1301 = vmax.xlane.f32.xlu0 %v1300
    %v1302 = vpop.xlane.xlu0 %1301
    %v1303 = vsub.f32 %v1291, %v1299
    %v1304 = vsub.f32 %v1294, %v1302
    %v1305 = vmul.f32 %v1303, 1.442695
    %v1306 = vpow.pop %v1305
    %v1307 = vmul.f32 %v1304, 1.442695
    %v1308 = vpow.pop %v1307
    %v1309 = vsel %vm266, %v1306, 0.0
    %1310 = vadd.xlane.f32.xlu0 %v1309
    %v1311 = vpop.xlane.xlu0 %1310
    %v1312 = vsel %vm266, %v1308, 0.0
    %1313 = vadd.xlane.f32.xlu0 %v1312
    %v1314 = vpop.xlane.xlu0 %1313
    %v1315 = vrcp.pop %v1311
    %v1316 = vmul.f32 %v1306, %v1315
    %v1317 = vrcp.pop %v1314
    %v1318 = vmul.f32 %v1308, %v1317
    %v1319 = vpack.c.bf16 %v1318, %v1316
    %1320 = vrot.lane.b32.xlu0 %v1125, 56
    %v1321 = vpop.permute.xlu0 %1320
    %v1324 = vsel %vm266, %v1319, 0
    %1326 = vmatprep.subr.bf16.mxu0 0
    %1327 = vmatpush1.bf16.msra.mxu0 %v1321
    %1328 = vmatprep.subr.bf16.mxu0 0
    %1329 = vmatpush1.bf16.msra.mxu0 0
    %1330 = vmatprep.subr.bf16.mxu0 0
    %1331 = vmatpush1.bf16.msra.mxu0 0
    %1332 = vmatprep.subr.bf16.mxu0 0
    %1333 = vmatpush1.bf16.msra.mxu0 0
    %1334 = vmatprep.subr.bf16.mxu0 0
    %1335 = vmatpush1.bf16.msra.mxu0 0
    %1336 = vmatprep.subr.bf16.mxu0 0
    %1337 = vmatpush1.bf16.msra.mxu0 0
    %1338 = vmatprep.subr.bf16.mxu0 0
    %1339 = vmatpush1.bf16.msra.mxu0 0
    %1340 = vmatprep.subr.bf16.mxu0 0
    %1341 = vmatpush1.bf16.msra.mxu0 0
    %1342 = vmatprep.subr.bf16.mxu0 0
    %1343 = vmatpush1.bf16.msra.mxu0 0
    %1344 = vmatprep.subr.bf16.mxu0 0
    %1345 = vmatpush1.bf16.msra.mxu0 0
    %1346 = vmatprep.subr.bf16.mxu0 0
    %1347 = vmatpush1.bf16.msra.mxu0 0
    %1348 = vmatprep.subr.bf16.mxu0 0
    %1349 = vmatpush1.bf16.msra.mxu0 0
    %1350 = vmatprep.subr.bf16.mxu0 0
    %1351 = vmatpush1.bf16.msra.mxu0 0
    %1352 = vmatprep.subr.bf16.mxu0 0
    %1353 = vmatpush1.bf16.msra.mxu0 0
    %1354 = vmatprep.subr.bf16.mxu0 0
    %1355 = vmatpush1.bf16.msra.mxu0 0
    %1356 = vmatprep.subr.bf16.mxu0 0
    %1357 = vmatpush1.bf16.msra.mxu0 0
    %1358 = vmatprep.mubr.bf16.mxu0 0
    %1359 = vmatmul.mubr.bf16.gmra.mrb[0].mxu0 %v1324
    %v1360 = vpop.f32.mrb[0].mxu0
    %v1361 = vadd.f32 0.0, %v1360
    %v1362 = vpop.f32.mrb[0].mxu0
    %v1363 = vpop.f32.mrb[0].mxu0
    %v1364 = vadd.f32 0.0, %v1363
    %v1365 = vpop.f32.mrb[0].mxu0
    %1366 = vdwg.mxu0
    %1367 = vrot.lane.b32.xlu0 %v1125, 112
    %v1368 = vpop.permute.xlu0 %1367
    %1369 = vrot.lane.b32.xlu0 %v1125, 80
    %v1370 = vpop.permute.xlu0 %1369
    %v1372 = vsel %vm218, %v1368, 0
    %v1375 = vsel %vm218, %v1370, 0
    %1377 = vmatprep.subr.bf16.mxu0 0
    %1378 = vmatpush1.bf16.xpose.msra.mxu0 %v1375
    %1379 = vmatprep.subr.bf16.mxu0 0
    %1380 = vmatpush1.bf16.xpose.msra.mxu0 0
    %1381 = vmatprep.subr.bf16.mxu0 0
    %1382 = vmatpush1.bf16.xpose.msra.mxu0 0
    %1383 = vmatprep.subr.bf16.mxu0 0
    %1384 = vmatpush1.bf16.xpose.msra.mxu0 0
    %1385 = vmatprep.subr.bf16.mxu0 0
    %1386 = vmatpush1.bf16.xpose.msra.mxu0 0
    %1387 = vmatprep.subr.bf16.mxu0 0
    %1388 = vmatpush1.bf16.xpose.msra.mxu0 0
    %1389 = vmatprep.subr.bf16.mxu0 0
    %1390 = vmatpush1.bf16.xpose.msra.mxu0 0
    %1391 = vmatprep.subr.bf16.mxu0 0
    %1392 = vmatpush1.bf16.xpose.msra.mxu0 0
    %1393 = vmatprep.subr.bf16.mxu0 0
    %1394 = vmatpush1.bf16.xpose.msra.mxu0 0
    %1395 = vmatprep.subr.bf16.mxu0 0
    %1396 = vmatpush1.bf16.xpose.msra.mxu0 0
    %1397 = vmatprep.subr.bf16.mxu0 0
    %1398 = vmatpush1.bf16.xpose.msra.mxu0 0
    %1399 = vmatprep.subr.bf16.mxu0 0
    %1400 = vmatpush1.bf16.xpose.msra.mxu0 0
    %1401 = vmatprep.subr.bf16.mxu0 0
    %1402 = vmatpush1.bf16.xpose.msra.mxu0 0
    %1403 = vmatprep.subr.bf16.mxu0 0
    %1404 = vmatpush1.bf16.xpose.msra.mxu0 0
    %1405 = vmatprep.subr.bf16.mxu0 0
    %1406 = vmatpush1.bf16.xpose.msra.mxu0 0
    %1407 = vmatprep.subr.bf16.mxu0 0
    %1408 = vmatpush1.bf16.xpose.msra.mxu0 0
    %1409 = vmatprep.mubr.bf16.mxu0 0
    %1410 = vmatmul.mubr.bf16.gmra.mrb[0].mxu0 %v1372
    %v1411 = vpop.f32.mrb[0].mxu0
    %v1412 = vadd.f32 %v142, %v1411
    %v1413 = vpop.f32.mrb[0].mxu0
    %v1414 = vpop.f32.mrb[0].mxu0
    %v1415 = vadd.f32 %v143, %v1414
    %v1416 = vpop.f32.mrb[0].mxu0
    %1417 = vdwg.mxu0
    %v1418 = vsel %vm266, %v1412, -inf
    %1419 = vmax.xlane.f32.xlu0 %v1418
    %v1420 = vpop.xlane.xlu0 %1419
    %v1421 = vsel %vm266, %v1415, -inf
    %1422 = vmax.xlane.f32.xlu0 %v1421
    %v1423 = vpop.xlane.xlu0 %1422
    %v1424 = vsub.f32 %v1412, %v1420
    %v1425 = vsub.f32 %v1415, %v1423
    %v1426 = vmul.f32 %v1424, 1.442695
    %v1427 = vpow.pop %v1426
    %v1428 = vmul.f32 %v1425, 1.442695
    %v1429 = vpow.pop %v1428
    %v1430 = vsel %vm266, %v1427, 0.0
    %1431 = vadd.xlane.f32.xlu0 %v1430
    %v1432 = vpop.xlane.xlu0 %1431
    %v1433 = vsel %vm266, %v1429, 0.0
    %1434 = vadd.xlane.f32.xlu0 %v1433
    %v1435 = vpop.xlane.xlu0 %1434
    %v1436 = vrcp.pop %v1432
    %v1437 = vmul.f32 %v1427, %v1436
    %v1438 = vrcp.pop %v1435
    %v1439 = vmul.f32 %v1429, %v1438
    %v1440 = vpack.c.bf16 %v1439, %v1437
    %1441 = vrot.lane.b32.xlu0 %v1125, 48
    %v1442 = vpop.permute.xlu0 %1441
    %v1445 = vsel %vm266, %v1440, 0
    %1447 = vmatprep.subr.bf16.mxu0 0
    %1448 = vmatpush1.bf16.msra.mxu0 %v1442
    %1449 = vmatprep.subr.bf16.mxu0 0
    %1450 = vmatpush1.bf16.msra.mxu0 0
    %1451 = vmatprep.subr.bf16.mxu0 0
    %1452 = vmatpush1.bf16.msra.mxu0 0
    %1453 = vmatprep.subr.bf16.mxu0 0
    %1454 = vmatpush1.bf16.msra.mxu0 0
    %1455 = vmatprep.subr.bf16.mxu0 0
    %1456 = vmatpush1.bf16.msra.mxu0 0
    %1457 = vmatprep.subr.bf16.mxu0 0
    %1458 = vmatpush1.bf16.msra.mxu0 0
    %1459 = vmatprep.subr.bf16.mxu0 0
    %1460 = vmatpush1.bf16.msra.mxu0 0
    %1461 = vmatprep.subr.bf16.mxu0 0
    %1462 = vmatpush1.bf16.msra.mxu0 0
    %1463 = vmatprep.subr.bf16.mxu0 0
    %1464 = vmatpush1.bf16.msra.mxu0 0
    %1465 = vmatprep.subr.bf16.mxu0 0
    %1466 = vmatpush1.bf16.msra.mxu0 0
    %1467 = vmatprep.subr.bf16.mxu0 0
    %1468 = vmatpush1.bf16.msra.mxu0 0
    %1469 = vmatprep.subr.bf16.mxu0 0
    %1470 = vmatpush1.bf16.msra.mxu0 0
    %1471 = vmatprep.subr.bf16.mxu0 0
    %1472 = vmatpush1.bf16.msra.mxu0 0
    %1473 = vmatprep.subr.bf16.mxu0 0
    %1474 = vmatpush1.bf16.msra.mxu0 0
    %1475 = vmatprep.subr.bf16.mxu0 0
    %1476 = vmatpush1.bf16.msra.mxu0 0
    %1477 = vmatprep.subr.bf16.mxu0 0
    %1478 = vmatpush1.bf16.msra.mxu0 0
    %1479 = vmatprep.mubr.bf16.mxu0 0
    %1480 = vmatmul.mubr.bf16.gmra.mrb[0].mxu0 %v1445
    %v1481 = vpop.f32.mrb[0].mxu0
    %v1482 = vadd.f32 0.0, %v1481
    %v1483 = vpop.f32.mrb[0].mxu0
    %v1484 = vpop.f32.mrb[0].mxu0
    %v1485 = vadd.f32 0.0, %v1484
    %v1486 = vpop.f32.mrb[0].mxu0
    %1487 = vdwg.mxu0
    %1488 = vrot.lane.b32.xlu0 %v1125, 104
    %v1489 = vpop.permute.xlu0 %1488
    %1490 = vrot.lane.b32.xlu0 %v1125, 72
    %v1491 = vpop.permute.xlu0 %1490
    %v1493 = vsel %vm218, %v1489, 0
    %v1496 = vsel %vm218, %v1491, 0
    %1498 = vmatprep.subr.bf16.mxu0 0
    %1499 = vmatpush1.bf16.xpose.msra.mxu0 %v1496
    %1500 = vmatprep.subr.bf16.mxu0 0
    %1501 = vmatpush1.bf16.xpose.msra.mxu0 0
    %1502 = vmatprep.subr.bf16.mxu0 0
    %1503 = vmatpush1.bf16.xpose.msra.mxu0 0
    %1504 = vmatprep.subr.bf16.mxu0 0
    %1505 = vmatpush1.bf16.xpose.msra.mxu0 0
    %1506 = vmatprep.subr.bf16.mxu0 0
    %1507 = vmatpush1.bf16.xpose.msra.mxu0 0
    %1508 = vmatprep.subr.bf16.mxu0 0
    %1509 = vmatpush1.bf16.xpose.msra.mxu0 0
    %1510 = vmatprep.subr.bf16.mxu0 0
    %1511 = vmatpush1.bf16.xpose.msra.mxu0 0
    %1512 = vmatprep.subr.bf16.mxu0 0
    %1513 = vmatpush1.bf16.xpose.msra.mxu0 0
    %1514 = vmatprep.subr.bf16.mxu0 0
    %1515 = vmatpush1.bf16.xpose.msra.mxu0 0
    %1516 = vmatprep.subr.bf16.mxu0 0
    %1517 = vmatpush1.bf16.xpose.msra.mxu0 0
    %1518 = vmatprep.subr.bf16.mxu0 0
    %1519 = vmatpush1.bf16.xpose.msra.mxu0 0
    %1520 = vmatprep.subr.bf16.mxu0 0
    %1521 = vmatpush1.bf16.xpose.msra.mxu0 0
    %1522 = vmatprep.subr.bf16.mxu0 0
    %1523 = vmatpush1.bf16.xpose.msra.mxu0 0
    %1524 = vmatprep.subr.bf16.mxu0 0
    %1525 = vmatpush1.bf16.xpose.msra.mxu0 0
    %1526 = vmatprep.subr.bf16.mxu0 0
    %1527 = vmatpush1.bf16.xpose.msra.mxu0 0
    %1528 = vmatprep.subr.bf16.mxu0 0
    %1529 = vmatpush1.bf16.xpose.msra.mxu0 0
    %1530 = vmatprep.mubr.bf16.mxu0 0
    %1531 = vmatmul.mubr.bf16.gmra.mrb[0].mxu0 %v1493
    %v1532 = vpop.f32.mrb[0].mxu0
    %v1533 = vadd.f32 %v142, %v1532
    %v1534 = vpop.f32.mrb[0].mxu0
    %v1535 = vpop.f32.mrb[0].mxu0
    %v1536 = vadd.f32 %v143, %v1535
    %v1537 = vpop.f32.mrb[0].mxu0
    %1538 = vdwg.mxu0
    %v1539 = vsel %vm266, %v1533, -inf
    %1540 = vmax.xlane.f32.xlu0 %v1539
    %v1541 = vpop.xlane.xlu0 %1540
    %v1542 = vsel %vm266, %v1536, -inf
    %1543 = vmax.xlane.f32.xlu0 %v1542
    %v1544 = vpop.xlane.xlu0 %1543
    %v1545 = vsub.f32 %v1533, %v1541
    %v1546 = vsub.f32 %v1536, %v1544
    %v1547 = vmul.f32 %v1545, 1.442695
    %v1548 = vpow.pop %v1547
    %v1549 = vmul.f32 %v1546, 1.442695
    %v1550 = vpow.pop %v1549
    %v1551 = vsel %vm266, %v1548, 0.0
    %1552 = vadd.xlane.f32.xlu0 %v1551
    %v1553 = vpop.xlane.xlu0 %1552
    %v1554 = vsel %vm266, %v1550, 0.0
    %1555 = vadd.xlane.f32.xlu0 %v1554
    %v1556 = vpop.xlane.xlu0 %1555
    %v1557 = vrcp.pop %v1553
    %v1558 = vmul.f32 %v1548, %v1557
    %v1559 = vrcp.pop %v1556
    %v1560 = vmul.f32 %v1550, %v1559
    %v1561 = vpack.c.bf16 %v1560, %v1558
    %1562 = vrot.lane.b32.xlu0 %v1125, 40
    %v1563 = vpop.permute.xlu0 %1562
    %v1566 = vsel %vm266, %v1561, 0
    %1568 = vmatprep.subr.bf16.mxu0 0
    %1569 = vmatpush1.bf16.msra.mxu0 %v1563
    %1570 = vmatprep.subr.bf16.mxu0 0
    %1571 = vmatpush1.bf16.msra.mxu0 0
    %1572 = vmatprep.subr.bf16.mxu0 0
    %1573 = vmatpush1.bf16.msra.mxu0 0
    %1574 = vmatprep.subr.bf16.mxu0 0
    %1575 = vmatpush1.bf16.msra.mxu0 0
    %1576 = vmatprep.subr.bf16.mxu0 0
    %1577 = vmatpush1.bf16.msra.mxu0 0
    %1578 = vmatprep.subr.bf16.mxu0 0
    %1579 = vmatpush1.bf16.msra.mxu0 0
    %1580 = vmatprep.subr.bf16.mxu0 0
    %1581 = vmatpush1.bf16.msra.mxu0 0
    %1582 = vmatprep.subr.bf16.mxu0 0
    %1583 = vmatpush1.bf16.msra.mxu0 0
    %1584 = vmatprep.subr.bf16.mxu0 0
    %1585 = vmatpush1.bf16.msra.mxu0 0
    %1586 = vmatprep.subr.bf16.mxu0 0
    %1587 = vmatpush1.bf16.msra.mxu0 0
    %1588 = vmatprep.subr.bf16.mxu0 0
    %1589 = vmatpush1.bf16.msra.mxu0 0
    %1590 = vmatprep.subr.bf16.mxu0 0
    %1591 = vmatpush1.bf16.msra.mxu0 0
    %1592 = vmatprep.subr.bf16.mxu0 0
    %1593 = vmatpush1.bf16.msra.mxu0 0
    %1594 = vmatprep.subr.bf16.mxu0 0
    %1595 = vmatpush1.bf16.msra.mxu0 0
    %1596 = vmatprep.subr.bf16.mxu0 0
    %1597 = vmatpush1.bf16.msra.mxu0 0
    %1598 = vmatprep.subr.bf16.mxu0 0
    %1599 = vmatpush1.bf16.msra.mxu0 0
    %1600 = vmatprep.mubr.bf16.mxu0 0
    %1601 = vmatmul.mubr.bf16.gmra.mrb[0].mxu0 %v1566
    %v1602 = vpop.f32.mrb[0].mxu0
    %v1603 = vadd.f32 0.0, %v1602
    %v1604 = vpop.f32.mrb[0].mxu0
    %v1605 = vpop.f32.mrb[0].mxu0
    %v1606 = vadd.f32 0.0, %v1605
    %v1607 = vpop.f32.mrb[0].mxu0
    %1608 = vdwg.mxu0
    %1611 = vrot.lane.b32.xlu0 %v1361, 8
    %v1612 = vpop.permute.xlu0 %1611
    %1613 = vrot.lane.b32.xlu0 %v1364, 8
    %v1614 = vpop.permute.xlu0 %1613
    %1619 = vrot.lane.b32.xlu0 %v1482, 16
    %v1620 = vpop.permute.xlu0 %1619
    %1621 = vrot.lane.b32.xlu0 %v1485, 16
    %v1622 = vpop.permute.xlu0 %1621
    %1627 = vrot.lane.b32.xlu0 %v1603, 24
    %v1628 = vpop.permute.xlu0 %1627
    %1629 = vrot.lane.b32.xlu0 %v1606, 24
    %v1630 = vpop.permute.xlu0 %1629
    %v1633 = vsel %vm218, %v1240, %v1612
    %v1634 = vsel %vm218, %v1243, %v1614
    %v1635 = vsel %vm266, %v1633, %v1620
    %v1636 = vsel %vm266, %v1634, %v1622
    %v1637 = vsel %vm728, %v1635, %v1628
    %v1638 = vsel %vm728, %v1636, %v1630
    %v1639 = vpack.c.bf16 %v1638, %v1637
    %s1640 = scalar_lea.vmem %s6, 16
    %v1641 = vld [vmem:[%s1640] sm:$0xf]
    %v1642 = vld [vmem:[%s1640 + $0x4] sm:$0xf]
    %v1643 = vld [vmem:[%s1640 + $0x8] sm:$0xf]
    %v1644 = vld [vmem:[%s1640 + $0xc] sm:$0xf]
    %v1645 = vlaneseq
    %v1646 = vshrl.u32 %v1645, 7
    %v1647 = vsub.s32 0, %v1646
    %v1648 = vrot.slane %v1054, %v1647
    %v1653 = vunpack.c.l.b16 %v1641
    %v1654 = vunpack.c.l.b16 %v1642
    %v1655 = vunpack.c.l.b16 %v1643
    %v1656 = vunpack.c.l.b16 %v1644
    %v1657 = vpack.c.b16 %v1654, %v1653
    %v1658 = vpack.c.b16 %v1656, %v1655
    %v1662 = vsel %vm169, %v1639, 0
    %1664 = vmatprep.subr.bf16.mxu0 0
    %1665 = vmatpush1.bf16.msra.mxu0 %v1657
    %1666 = vmatprep.subr.bf16.mxu0 0
    %1667 = vmatpush1.bf16.msra.mxu0 %v1658
    %1668 = vmatprep.subr.bf16.mxu0 0
    %1669 = vmatpush1.bf16.msra.mxu0 0
    %1670 = vmatprep.subr.bf16.mxu0 0
    %1671 = vmatpush1.bf16.msra.mxu0 0
    %1672 = vmatprep.subr.bf16.mxu0 0
    %1673 = vmatpush1.bf16.msra.mxu0 0
    %1674 = vmatprep.subr.bf16.mxu0 0
    %1675 = vmatpush1.bf16.msra.mxu0 0
    %1676 = vmatprep.subr.bf16.mxu0 0
    %1677 = vmatpush1.bf16.msra.mxu0 0
    %1678 = vmatprep.subr.bf16.mxu0 0
    %1679 = vmatpush1.bf16.msra.mxu0 0
    %1680 = vmatprep.subr.bf16.mxu0 0
    %1681 = vmatpush1.bf16.msra.mxu0 0
    %1682 = vmatprep.subr.bf16.mxu0 0
    %1683 = vmatpush1.bf16.msra.mxu0 0
    %1684 = vmatprep.subr.bf16.mxu0 0
    %1685 = vmatpush1.bf16.msra.mxu0 0
    %1686 = vmatprep.subr.bf16.mxu0 0
    %1687 = vmatpush1.bf16.msra.mxu0 0
    %1688 = vmatprep.subr.bf16.mxu0 0
    %1689 = vmatpush1.bf16.msra.mxu0 0
    %1690 = vmatprep.subr.bf16.mxu0 0
    %1691 = vmatpush1.bf16.msra.mxu0 0
    %1692 = vmatprep.subr.bf16.mxu0 0
    %1693 = vmatpush1.bf16.msra.mxu0 0
    %1694 = vmatprep.subr.bf16.mxu0 0
    %1695 = vmatpush1.bf16.msra.mxu0 0
    %1696 = vmatprep.mubr.bf16.mxu0 0
    %1697 = vmatmul.mubr.bf16.gmra.mrb[0].mxu0 %v1662
    %v1698 = vpop.f32.mrb[0].mxu0
    %v1699 = vadd.f32 %v1648, %v1698
    %v1700 = vpop.f32.mrb[0].mxu0
    %v1701 = vpop.f32.mrb[0].mxu0
    %v1702 = vadd.f32 %v1648, %v1701
    %v1703 = vpop.f32.mrb[0].mxu0
    %1704 = vdwg.mxu0
    %v1705 = vadd.f32 %v1051, %v1699
    %v1706 = vadd.f32 %v1052, %v1702
    %v1707 = vsel %vm169, %v1705, 0.0
    %1708 = vadd.xlane.f32.xlu0 %v1707
    %v1709 = vpop.xlane.xlu0 %1708
    %v1710 = vsel %vm169, %v1706, 0.0
    %1711 = vadd.xlane.f32.xlu0 %v1710
    %v1712 = vpop.xlane.xlu0 %1711
    %v1713 = vmul.f32 %v1709, %v804
    %v1714 = vmul.f32 %v1712, %v804
    %v1715 = vmul.f32 %v1705, %v1705
    %v1716 = vmul.f32 %v1706, %v1706
    %v1717 = vsel %vm169, %v1715, 0.0
    %1718 = vadd.xlane.f32.xlu0 %v1717
    %v1719 = vpop.xlane.xlu0 %1718
    %v1720 = vsel %vm169, %v1716, 0.0
    %1721 = vadd.xlane.f32.xlu0 %v1720
    %v1722 = vpop.xlane.xlu0 %1721
    %v1723 = vmul.f32 %v1719, %v804
    %v1724 = vmul.f32 %v1722, %v804
    %v1725 = vmul.f32 %v1713, %v1713
    %v1726 = vmul.f32 %v1714, %v1714
    %v1727 = vsub.f32 %v1723, %v1725
    %v1728 = vsub.f32 %v1724, %v1726
    %v1729 = vsub.f32 %v1705, %v1713
    %v1730 = vsub.f32 %v1706, %v1714
    %v1731 = vadd.f32 %v1727, 1e-12
    %v1732 = vadd.f32 %v1728, 1e-12
    %v1733 = vrsqrt.pop %v1731
    %v1734 = vrsqrt.pop %v1732
    %v1735 = vmul.f32 %v1729, %v1733
    %v1736 = vmul.f32 %v1730, %v1734
    %v1737 = vlaneseq
    %v1738 = vshrl.u32 %v1737, 7
    %v1739 = vsub.s32 1, %v1738
    %v1740 = vrot.slane %v1054, %v1739
    %v1741 = vmul.f32 %v1735, %v1740
    %v1742 = vmul.f32 %v1736, %v1740
    %v1743 = vlaneseq
    %v1744 = vshrl.u32 %v1743, 7
    %v1745 = vsub.s32 2, %v1744
    %v1746 = vrot.slane %v1054, %v1745
    %v1747 = vadd.f32 %v1741, %v1746
    %v1748 = vadd.f32 %v1742, %v1746
    %v1749 = vpack.c.bf16 %v1748, %v1747
    %s1750 = scalar_lea.vmem %s7, 16
    %v1751 = vld [vmem:[%s1750] sm:$0xf]
    %v1752 = vld [vmem:[%s1750 + $0x4] sm:$0xf]
    %v1753 = vld [vmem:[%s1750 + $0x8] sm:$0xf]
    %v1754 = vld [vmem:[%s1750 + $0xc] sm:$0xf]
    %s1755 = scalar_lea.vmem %s8, 1
    %v1756 = vld [vmem:[%s1755] sm:$0x1]
    %v1758 = vlaneseq
    %v1759 = vshrl.u32 %v1758, 7
    %v1760 = vsub.s32 0, %v1759
    %v1761 = vrot.slane %v1756, %v1760
    %v1767 = vunpack.c.l.b16 %v1751
    %v1768 = vunpack.c.l.b16 %v1752
    %v1769 = vunpack.c.l.b16 %v1753
    %v1770 = vunpack.c.l.b16 %v1754
    %v1771 = vpack.c.b16 %v1768, %v1767
    %v1772 = vpack.c.b16 %v1770, %v1769
    %v1776 = vsel %vm169, %v1749, 0
    %1778 = vmatprep.subr.bf16.mxu0 0
    %1779 = vmatpush1.bf16.msra.mxu0 %v1771
    %1780 = vmatprep.subr.bf16.mxu0 0
    %1781 = vmatpush1.bf16.msra.mxu0 %v1772
    %1782 = vmatprep.subr.bf16.mxu0 0
    %1783 = vmatpush1.bf16.msra.mxu0 0
    %1784 = vmatprep.subr.bf16.mxu0 0
    %1785 = vmatpush1.bf16.msra.mxu0 0
    %1786 = vmatprep.subr.bf16.mxu0 0
    %1787 = vmatpush1.bf16.msra.mxu0 0
    %1788 = vmatprep.subr.bf16.mxu0 0
    %1789 = vmatpush1.bf16.msra.mxu0 0
    %1790 = vmatprep.subr.bf16.mxu0 0
    %1791 = vmatpush1.bf16.msra.mxu0 0
    %1792 = vmatprep.subr.bf16.mxu0 0
    %1793 = vmatpush1.bf16.msra.mxu0 0
    %1794 = vmatprep.subr.bf16.mxu0 0
    %1795 = vmatpush1.bf16.msra.mxu0 0
    %1796 = vmatprep.subr.bf16.mxu0 0
    %1797 = vmatpush1.bf16.msra.mxu0 0
    %1798 = vmatprep.subr.bf16.mxu0 0
    %1799 = vmatpush1.bf16.msra.mxu0 0
    %1800 = vmatprep.subr.bf16.mxu0 0
    %1801 = vmatpush1.bf16.msra.mxu0 0
    %1802 = vmatprep.subr.bf16.mxu0 0
    %1803 = vmatpush1.bf16.msra.mxu0 0
    %1804 = vmatprep.subr.bf16.mxu0 0
    %1805 = vmatpush1.bf16.msra.mxu0 0
    %1806 = vmatprep.subr.bf16.mxu0 0
    %1807 = vmatpush1.bf16.msra.mxu0 0
    %1808 = vmatprep.subr.bf16.mxu0 0
    %1809 = vmatpush1.bf16.msra.mxu0 0
    %1810 = vmatprep.mubr.bf16.mxu0 0
    %1811 = vmatmul.mubr.bf16.gmra.mrb[0].mxu0 %v1776
    %v1812 = vpop.f32.mrb[0].mxu0
    %v1813 = vadd.f32 %v1761, %v1812
    %v1814 = vpop.f32.mrb[0].mxu0
    %v1815 = vpop.f32.mrb[0].mxu0
    %v1816 = vadd.f32 %v1761, %v1815
    %v1817 = vpop.f32.mrb[0].mxu0
    %1818 = vdwg.mxu0
    %v1819 = vmul.f32 %v1813, %v1813
    %v1820 = vmul.f32 %v1816, %v1816
    %v1821 = vmul.f32 %v1813, %v1819
    %v1822 = vmul.f32 %v1816, %v1820
    %v1823 = vmul.f32 %v1821, 0.044715
    %v1824 = vmul.f32 %v1822, 0.044715
    %v1825 = vadd.f32 %v1813, %v1823
    %v1826 = vadd.f32 %v1816, %v1824
    %v1827 = vmul.f32 %v1825, 0.7978846
    %v1828 = vmul.f32 %v1826, 0.7978846
    %v1829 = vtanh.pop %v1827
    %v1830 = vtanh.pop %v1828
    %v1831 = vadd.f32 %v1829, 1.0
    %v1832 = vadd.f32 %v1830, 1.0
    %v1833 = vmul.f32 %v1831, 0.5
    %v1834 = vmul.f32 %v1832, 0.5
    %v1835 = vmul.f32 %v1813, %v1833
    %v1836 = vmul.f32 %v1816, %v1834
    %v1837 = vpack.c.bf16 %v1836, %v1835
    %s1838 = scalar_lea.vmem %s9, 32
    %v1839 = vld [vmem:[%s1838] sm:$0xf]
    %v1840 = vld [vmem:[%s1838 + $0x4] sm:$0xf]
    %v1841 = vld [vmem:[%s1838 + $0x8] sm:$0xf]
    %v1842 = vld [vmem:[%s1838 + $0xc] sm:$0xf]
    %v1843 = vld [vmem:[%s1838 + $0x10] sm:$0xf]
    %v1844 = vld [vmem:[%s1838 + $0x14] sm:$0xf]
    %v1845 = vld [vmem:[%s1838 + $0x18] sm:$0xf]
    %v1846 = vld [vmem:[%s1838 + $0x1c] sm:$0xf]
    %v1847 = vlaneseq
    %v1848 = vshrl.u32 %v1847, 7
    %v1849 = vsub.s32 3, %v1848
    %v1850 = vrot.slane %v1054, %v1849
    %v1859 = vunpack.c.l.b16 %v1839
    %v1860 = vunpack.c.l.b16 %v1840
    %v1861 = vunpack.c.l.b16 %v1841
    %v1862 = vunpack.c.l.b16 %v1842
    %v1863 = vunpack.c.l.b16 %v1843
    %v1864 = vunpack.c.l.b16 %v1844
    %v1865 = vunpack.c.l.b16 %v1845
    %v1866 = vunpack.c.l.b16 %v1846
    %v1867 = vpack.c.b16 %v1860, %v1859
    %v1868 = vpack.c.b16 %v1862, %v1861
    %v1869 = vpack.c.b16 %v1864, %v1863
    %v1870 = vpack.c.b16 %v1866, %v1865
    %v1876 = vsel %vm964, %v1837, 0
    %1878 = vmatprep.subr.bf16.mxu0 0
    %1879 = vmatpush1.bf16.msra.mxu0 %v1867
    %1880 = vmatprep.subr.bf16.mxu0 0
    %1881 = vmatpush1.bf16.msra.mxu0 %v1868
    %1882 = vmatprep.subr.bf16.mxu0 0
    %1883 = vmatpush1.bf16.msra.mxu0 %v1869
    %1884 = vmatprep.subr.bf16.mxu0 0
    %1885 = vmatpush1.bf16.msra.mxu0 %v1870
    %1886 = vmatprep.subr.bf16.mxu0 0
    %1887 = vmatpush1.bf16.msra.mxu0 0
    %1888 = vmatprep.subr.bf16.mxu0 0
    %1889 = vmatpush1.bf16.msra.mxu0 0
    %1890 = vmatprep.subr.bf16.mxu0 0
    %1891 = vmatpush1.bf16.msra.mxu0 0
    %1892 = vmatprep.subr.bf16.mxu0 0
    %1893 = vmatpush1.bf16.msra.mxu0 0
    %1894 = vmatprep.subr.bf16.mxu0 0
    %1895 = vmatpush1.bf16.msra.mxu0 0
    %1896 = vmatprep.subr.bf16.mxu0 0
    %1897 = vmatpush1.bf16.msra.mxu0 0
    %1898 = vmatprep.subr.bf16.mxu0 0
    %1899 = vmatpush1.bf16.msra.mxu0 0
    %1900 = vmatprep.subr.bf16.mxu0 0
    %1901 = vmatpush1.bf16.msra.mxu0 0
    %1902 = vmatprep.subr.bf16.mxu0 0
    %1903 = vmatpush1.bf16.msra.mxu0 0
    %1904 = vmatprep.subr.bf16.mxu0 0
    %1905 = vmatpush1.bf16.msra.mxu0 0
    %1906 = vmatprep.subr.bf16.mxu0 0
    %1907 = vmatpush1.bf16.msra.mxu0 0
    %1908 = vmatprep.subr.bf16.mxu0 0
    %1909 = vmatpush1.bf16.msra.mxu0 0
    %1910 = vmatprep.mubr.bf16.mxu0 0
    %1911 = vmatmul.mubr.bf16.gmra.mrb[0].mxu0 %v1876
    %v1912 = vpop.f32.mrb[0].mxu0
    %v1913 = vadd.f32 %v1850, %v1912
    %v1914 = vpop.f32.mrb[0].mxu0
    %v1915 = vpop.f32.mrb[0].mxu0
    %v1916 = vadd.f32 %v1850, %v1915
    %v1917 = vpop.f32.mrb[0].mxu0
    %1918 = vdwg.mxu0
    %v1919 = vadd.f32 %v1747, %v1913
    %v1920 = vadd.f32 %v1748, %v1916
    %v1921 = vsel %vm169, %v1919, 0.0
    %1922 = vadd.xlane.f32.xlu0 %v1921
    %v1923 = vpop.xlane.xlu0 %1922
    %v1924 = vsel %vm169, %v1920, 0.0
    %1925 = vadd.xlane.f32.xlu0 %v1924
    %v1926 = vpop.xlane.xlu0 %1925
    %v1927 = vmul.f32 %v1923, %v804
    %v1928 = vmul.f32 %v1926, %v804
    %v1929 = vmul.f32 %v1919, %v1919
    %v1930 = vmul.f32 %v1920, %v1920
    %v1931 = vsel %vm169, %v1929, 0.0
    %1932 = vadd.xlane.f32.xlu0 %v1931
    %v1933 = vpop.xlane.xlu0 %1932
    %v1934 = vsel %vm169, %v1930, 0.0
    %1935 = vadd.xlane.f32.xlu0 %v1934
    %v1936 = vpop.xlane.xlu0 %1935
    %v1937 = vmul.f32 %v1933, %v804
    %v1938 = vmul.f32 %v1936, %v804
    %v1939 = vmul.f32 %v1927, %v1927
    %v1940 = vmul.f32 %v1928, %v1928
    %v1941 = vsub.f32 %v1937, %v1939
    %v1942 = vsub.f32 %v1938, %v1940
    %v1943 = vsub.f32 %v1919, %v1927
    %v1944 = vsub.f32 %v1920, %v1928
    %v1945 = vadd.f32 %v1941, 1e-12
    %v1946 = vadd.f32 %v1942, 1e-12
    %v1947 = vrsqrt.pop %v1945
    %v1948 = vrsqrt.pop %v1946
    %v1949 = vmul.f32 %v1943, %v1947
    %v1950 = vmul.f32 %v1944, %v1948
    %v1951 = vlaneseq
    %v1952 = vshrl.u32 %v1951, 7
    %v1953 = vsub.s32 4, %v1952
    %v1954 = vrot.slane %v1054, %v1953
    %v1955 = vmul.f32 %v1949, %v1954
    %v1956 = vmul.f32 %v1950, %v1954
    %v1957 = vlaneseq
    %v1958 = vshrl.u32 %v1957, 7
    %v1959 = vsub.s32 5, %v1958
    %v1960 = vrot.slane %v1054, %v1959
    %v1961 = vadd.f32 %v1955, %v1960
    %v1962 = vadd.f32 %v1956, %v1960
    %v1963 = vpack.c.bf16 %v1962, %v1961
    %v1964 = vld [vmem:[%s11] sm:$0xf]
    %v1965 = vld [vmem:[%s11 + $0x4] sm:$0xf]
    %v1966 = vld [vmem:[%s11 + $0x8] sm:$0xf]
    %v1967 = vld [vmem:[%s11 + $0xc] sm:$0xf]
    %v1968 = vld [vmem:[%s12] sm:$0x1]
    %v1970 = vlaneseq
    %v1971 = vshrl.u32 %v1970, 7
    %v1972 = vsub.s32 0, %v1971
    %v1973 = vrot.slane %v1968, %v1972
    %v1979 = vunpack.c.l.b16 %v1964
    %v1980 = vunpack.c.l.b16 %v1965
    %v1981 = vunpack.c.l.b16 %v1966
    %v1982 = vunpack.c.l.b16 %v1967
    %v1983 = vpack.c.b16 %v1980, %v1979
    %v1984 = vpack.c.b16 %v1982, %v1981
    %v1988 = vsel %vm169, %v1963, 0
    %1990 = vmatprep.subr.bf16.mxu0 0
    %1991 = vmatpush1.bf16.msra.mxu0 %v1983
    %1992 = vmatprep.subr.bf16.mxu0 0
    %1993 = vmatpush1.bf16.msra.mxu0 %v1984
    %1994 = vmatprep.subr.bf16.mxu0 0
    %1995 = vmatpush1.bf16.msra.mxu0 0
    %1996 = vmatprep.subr.bf16.mxu0 0
    %1997 = vmatpush1.bf16.msra.mxu0 0
    %1998 = vmatprep.subr.bf16.mxu0 0
    %1999 = vmatpush1.bf16.msra.mxu0 0
    %2000 = vmatprep.subr.bf16.mxu0 0
    %2001 = vmatpush1.bf16.msra.mxu0 0
    %2002 = vmatprep.subr.bf16.mxu0 0
    %2003 = vmatpush1.bf16.msra.mxu0 0
    %2004 = vmatprep.subr.bf16.mxu0 0
    %2005 = vmatpush1.bf16.msra.mxu0 0
    %2006 = vmatprep.subr.bf16.mxu0 0
    %2007 = vmatpush1.bf16.msra.mxu0 0
    %2008 = vmatprep.subr.bf16.mxu0 0
    %2009 = vmatpush1.bf16.msra.mxu0 0
    %2010 = vmatprep.subr.bf16.mxu0 0
    %2011 = vmatpush1.bf16.msra.mxu0 0
    %2012 = vmatprep.subr.bf16.mxu0 0
    %2013 = vmatpush1.bf16.msra.mxu0 0
    %2014 = vmatprep.subr.bf16.mxu0 0
    %2015 = vmatpush1.bf16.msra.mxu0 0
    %2016 = vmatprep.subr.bf16.mxu0 0
    %2017 = vmatpush1.bf16.msra.mxu0 0
    %2018 = vmatprep.subr.bf16.mxu0 0
    %2019 = vmatpush1.bf16.msra.mxu0 0
    %2020 = vmatprep.subr.bf16.mxu0 0
    %2021 = vmatpush1.bf16.msra.mxu0 0
    %2022 = vmatprep.mubr.bf16.mxu0 0
    %2023 = vmatmul.mubr.bf16.gmra.mrb[0].mxu0 %v1988
    %v2024 = vpop.f32.mrb[0].mxu0
    %v2025 = vadd.f32 %v1973, %v2024
    %v2026 = vpop.f32.mrb[0].mxu0
    %v2027 = vpop.f32.mrb[0].mxu0
    %v2028 = vadd.f32 %v1973, %v2027
    %v2029 = vpop.f32.mrb[0].mxu0
    %2030 = vdwg.mxu0
    %2031 = vst [vmem:[#allocation2] sm:$0xff] %v2025
    %2032 = vst [vmem:[#allocation2 + $0x8] sm:$0xff] %v2028
    // Predicated region
    $region54: #{tpu_custom_call.1} parent=1 // pred_check
      _
    $region55: #{tpu_custom_call.1} parent=1 // pred_check_branch
      %2034 = sbr.rel (0) target = $region57
    $region56: #{tpu_custom_call.1} parent=1 // pred_region
      %s2036 = ssub.s32 256, 256
      %2037 = vsyncadd [#allocation3], %s2036
      %s2038 = sshll.u32 [#allocation2], 4
      %s2039 = int_to_ptr.vmem [resolvable:$true] %s2038
      %2044 = dma.vmem_to_hbm [thread:$0]  %s2039, 256, %s13, [#allocation3], 128, 128, 8
    $region57: #{tpu_custom_call.1} parent=1 // pred_fallthru
      _
    // Predicated region
    $region58: #{tpu_custom_call.1} parent=1 // pred_check
      _
    $region59: #{tpu_custom_call.1} parent=1 // pred_check_branch
      %2046 = sbr.rel (0) target = $region61
    $region60: #{tpu_custom_call.1} parent=1 // pred_region
      %2047 = dma.done [#allocation3], 256
    $region61: #{tpu_custom_call.1} parent=1 // pred_fallthru
      _
    %2048 = vsyncpa [#allocation3], 1

</llo_original>
